<compile_context>
chip_gen: v7x
topology: tpu7x:2x2x1
jax: 0.10.0
libtpu: 0.0.40
codegen_flags: <defaults>
</compile_context>

<pallas_src>
import functools

import jax
import jax.numpy as jnp
from jax import lax
from jax.experimental import pallas as pl
from jax.experimental.pallas import tpu as pltpu

_MASK_VALUE = -1e30  # big finite negative: exp() underflows to 0 exactly, NaN-safe


def _mha_kernel(num_heads, head_size,
                x_ref, wqkv_ref, wp_ref, bp_ref, out_ref, acc_ref):
    """One grid step = (batch b, head h): per-head QKV -> causal softmax -> accumulate
    this head's contribution to the output projection into acc_ref."""
    h = pl.program_id(1)

    @pl.when(h == 0)
    def _init():
        acc_ref[...] = jnp.zeros_like(acc_ref)

    x = x_ref[...]                                                   # (T, C) bf16
    T = x.shape[0]

    # Per-head fused QKV projection: full contraction depth K=C, N=3*hs lanes.
    qkv = jnp.dot(x, wqkv_ref[...], preferred_element_type=jnp.float32)   # (T, 3hs) f32
    qkv = qkv.astype(jnp.bfloat16)          # single cast; all dots below consume bf16
    q = qkv[:, :head_size]
    k = qkv[:, head_size:2 * head_size]
    v = qkv[:, 2 * head_size:]

    # Causal keep-mask (tril).
    row = lax.broadcasted_iota(jnp.int32, (T, T), 0)
    col = lax.broadcasted_iota(jnp.int32, (T, T), 1)
    keep = col <= row

    # Scores: contract K's head dim directly (no explicit transpose / relayout).
    s = lax.dot_general(q, k, (((1,), (1,)), ((), ())),
                        preferred_element_type=jnp.float32)          # (T, T) f32
    s = jnp.where(keep, s, _MASK_VALUE)

    # Numerically-stable softmax in f32 (exp on EUP, approx reciprocal on EUP).
    m = jnp.max(s, axis=-1, keepdims=True)
    p = jnp.exp(s - m)
    p = p * pl.reciprocal(jnp.sum(p, axis=-1, keepdims=True), approx=True)
    # dropout(p=0.2) on attention weights -> identity (eval mode)

    oh = jnp.dot(p.astype(jnp.bfloat16), v,
                 preferred_element_type=jnp.float32)                  # (T, hs) f32

    # Accumulate this head's slice of the output projection (lane-dense, N=C).
    acc_ref[...] += jnp.dot(oh.astype(jnp.bfloat16), wp_ref[...],
                            preferred_element_type=jnp.float32)       # (T, C) f32

    @pl.when(h == num_heads - 1)
    def _finalize():
        # dropout(p=0.2) on the projection output -> identity (eval mode)
        out_ref[...] = (acc_ref[...] + bp_ref[...]).astype(out_ref.dtype)


def _vmem_budget_bytes():
    """Physical VMEM with ~25% headroom; safe fallback = v7x per-core 64 MiB."""
    try:
        cap = pltpu.get_tpu_info().vmem_capacity_bytes
    except Exception:
        cap = 64 * 2 ** 20
    return int(0.75 * cap)


@jax.jit
def multi_head_attention(x, wq, wk, wv, w_proj, b_proj):
    """x: (B,T,C); wq/wk/wv: (nh, C, hs); w_proj: (C, C) pre-transposed (in, out);
    b_proj: (1, C).  Returns bf16 (B, T, C)."""
    B, T, C = x.shape
    nh, _, hs = wq.shape
    assert nh * hs == C

    scale = float(C) ** -0.5          # reference scales by n_embd, not head_size

    # Host-side packing (in a real model done once at weight-load time):
    #   * fold the softmax scale into W_q,
    #   * pack per-head Q|K|V into (nh, C, 3*hs) so each grid step streams only that
    #     head's weight block (the DMA pipelines across head steps),
    #   * reshape the output projection into per-head row blocks (nh, hs, C).
    w_qkv = jnp.concatenate([wq * scale, wk, wv], axis=-1).astype(jnp.bfloat16)
    wp = w_proj.reshape(nh, hs, C).astype(jnp.bfloat16)
    bp = b_proj.reshape(1, C).astype(jnp.float32)
    xb = x.astype(jnp.bfloat16)

    # Rough per-step VMEM footprint (bytes): double-buffered tiles + f32 temporaries.
    bf16, f32 = 2, 4
    footprint = (2 * T * C * bf16          # x tile (double-buffered)
                 + 2 * T * C * bf16        # out tile (bf16)
                 + 2 * C * 3 * hs * bf16   # per-head QKV weight block
                 + 2 * hs * C * bf16       # per-head proj weight block
                 + 2 * C * f32             # bias
                 + T * C * f32             # accumulator scratch
                 + T * 3 * hs * f32        # qkv temporary
                 + 4 * T * T * f32)        # score / softmax temporaries
    vmem_limit = int(min(max(2 * footprint, 16 * 2 ** 20), _vmem_budget_bytes()))

    cost = pl.CostEstimate(
        flops=2 * B * nh * (T * C * 3 * hs + 2 * T * T * hs + T * hs * C),
        transcendentals=B * nh * T * T,
        bytes_accessed=(xb.size * bf16 + w_qkv.size * bf16 + wp.size * bf16
                        + bp.size * f32 + B * T * C * bf16),
    )

    kernel = functools.partial(_mha_kernel, nh, hs)

    return pl.pallas_call(
        kernel,
        out_shape=jax.ShapeDtypeStruct((B, T, C), jnp.bfloat16),
        grid_spec=pltpu.PrefetchScalarGridSpec(
            num_scalar_prefetch=0,
            grid=(B, nh),
            in_specs=[
                pl.BlockSpec((None, T, C), lambda b, h: (b, 0, 0)),       # x (b squeezed)
                pl.BlockSpec((None, C, 3 * hs), lambda b, h: (h, 0, 0)),  # per-head QKV W
                pl.BlockSpec((None, hs, C), lambda b, h: (h, 0, 0)),      # per-head proj W
                pl.BlockSpec((1, C), lambda b, h: (0, 0)),                # proj bias
            ],
            out_specs=pl.BlockSpec((None, T, C), lambda b, h: (b, 0, 0)),
            scratch_shapes=[pltpu.VMEM((T, C), jnp.float32)],             # proj accumulator
        ),
        compiler_params=pltpu.CompilerParams(
            dimension_semantics=("parallel", "arbitrary"),
            vmem_limit_bytes=vmem_limit,
        ),
        cost_estimate=cost,
    )(xb, w_qkv, wp, bp)


def _reference(x, wq, wk, wv, w_proj, b_proj):
    """Plain-JAX f32 reference replicating the PyTorch forward (eval mode)."""
    B, T, C = x.shape
    nh, _, hs = wq.shape
    scale = float(C) ** -0.5
    tril = jnp.tril(jnp.ones((T, T), dtype=bool))
    outs = []
    for h in range(nh):
        q = x @ wq[h]
        k = x @ wk[h]
        v = x @ wv[h]
        wei = (q @ jnp.swapaxes(k, -1, -2)) * scale
        wei = jnp.where(tril, wei, -jnp.inf)
        wei = jax.nn.softmax(wei, axis=-1)
        outs.append(wei @ v)
    cat = jnp.concatenate(outs, axis=-1)
    return cat @ w_proj + b_proj[0]


if __name__ == "__main__":
    # Shapes implied by the module: n_embd=384, block_size=64; 6 heads of size 64.
    B, T = 2, 64
    n_embd = 384
    num_heads = 6
    head_size = n_embd // num_heads

    key = jax.random.PRNGKey(0)
    kx, kq, kk, kv, kp, kb = jax.random.split(key, 6)

    x = jax.random.normal(kx, (B, T, n_embd), dtype=jnp.float32)

    # PyTorch Linear weights are (out, in); stored pre-transposed as (in, out)
    # so the math is x @ W.
    wq = 0.02 * jax.random.normal(kq, (num_heads, n_embd, head_size), dtype=jnp.float32)
    wk = 0.02 * jax.random.normal(kk, (num_heads, n_embd, head_size), dtype=jnp.float32)
    wv = 0.02 * jax.random.normal(kv, (num_heads, n_embd, head_size), dtype=jnp.float32)
    w_proj = 0.02 * jax.random.normal(kp, (n_embd, n_embd), dtype=jnp.float32)
    b_proj = 0.02 * jax.random.normal(kb, (1, n_embd), dtype=jnp.float32)

    out = jax.block_until_ready(multi_head_attention(x, wq, wk, wv, w_proj, b_proj))
    ref = _reference(x, wq, wk, wv, w_proj, b_proj)

    assert out.shape == (B, T, n_embd)
    # bf16 MXU inputs / bf16 output with f32 accumulation -> loose tolerance vs f32 ref.
    out_f32 = out.astype(jnp.float32)
    assert jnp.allclose(out_f32, ref, atol=2e-2, rtol=2e-2), (
        f"mismatch vs reference; max abs diff "
        f"{float(jnp.max(jnp.abs(out_f32 - ref)))}")
    print("KERNEL_OK")
</pallas_src>

<mosaic_0001>
module attributes {stable_mosaic.version = 11 : i64} {
  func.func @_mha_kernel(%arg0: i32, %arg1: i32, %arg2: memref<1x64x384xbf16, #tpu.memory_space<vmem>>, %arg3: memref<1x384x192xbf16, #tpu.memory_space<vmem>>, %arg4: memref<1x64x384xbf16, #tpu.memory_space<vmem>>, %arg5: memref<1x384xf32, #tpu.memory_space<vmem>>, %arg6: memref<1x64x384xbf16, #tpu.memory_space<vmem>>, %arg7: memref<64x384xf32, #tpu.memory_space<vmem>>) attributes {dimension_semantics = [#tpu.dimension_semantics<parallel>, #tpu.dimension_semantics<arbitrary>], iteration_bounds = array<i64: 2, 6>, scalar_prefetch = 0 : i64, scratch_operands = 1 : i64, tpu.core_type = #tpu.core_type<tc>, window_params = [{transform_indices = @transform_0, window_bounds = array<i64: 1, 64, 384>}, {transform_indices = @transform_1, window_bounds = array<i64: 1, 384, 192>}, {transform_indices = @transform_2, window_bounds = array<i64: 1, 64, 384>}, {pipeline_mode = #tpu.pipeline_mode<synchronous>, transform_indices = @transform_3, window_bounds = array<i64: 1, 384>}, {transform_indices = @transform_4, window_bounds = array<i64: 1, 64, 384>}]} {
    %c0_i32 = arith.constant 0 : i32
    %0 = arith.cmpi eq, %arg1, %c0_i32 : i32
    %1 = arith.extui %0 : i1 to i32
    %c0_i32_0 = arith.constant 0 : i32
    %2 = arith.cmpi ne, %1, %c0_i32_0 : i32
    scf.if %2 {
      %cst_20 = arith.constant 0.000000e+00 : f32
      %40 = vector.broadcast %cst_20 : f32 to vector<64x384xf32>
      %c0_21 = arith.constant 0 : index
      %c0_22 = arith.constant 0 : index
      %41 = vector.load %arg7[%c0_21, %c0_22] : memref<64x384xf32, #tpu.memory_space<vmem>>, vector<64x384xf32>
      tpu.vector_store %arg7[%c0_21, %c0_22], %40 {strides = array<i32>} : memref<64x384xf32, #tpu.memory_space<vmem>>, vector<64x384xf32>,
    } else {
    }
    %c0 = arith.constant 0 : index
    %c0_1 = arith.constant 0 : index
    %c0_2 = arith.constant 0 : index
    %3 = vector.load %arg2[%c0, %c0_1, %c0_2] : memref<1x64x384xbf16, #tpu.memory_space<vmem>>, vector<1x64x384xbf16>
    %4 = vector.shape_cast %3 : vector<1x64x384xbf16> to vector<64x384xbf16>
    %c0_3 = arith.constant 0 : index
    %c0_4 = arith.constant 0 : index
    %c0_5 = arith.constant 0 : index
    %5 = vector.load %arg3[%c0_3, %c0_4, %c0_5] : memref<1x384x192xbf16, #tpu.memory_space<vmem>>, vector<1x384x192xbf16>
    %6 = vector.shape_cast %5 : vector<1x384x192xbf16> to vector<384x192xbf16>
    %cst = arith.constant dense<0.000000e+00> : vector<64x192xf32>
    %7 = tpu.matmul %4, %6, %cst {dimension_numbers = #tpu.dot_dimension_numbers<[1], [0], [0], [1], [0, 0, 1, 1], [], []>} : vector<64x384xbf16>, vector<384x192xbf16>, vector<64x192xf32> -> vector<64x192xf32>
    %8 = arith.truncf %7 : vector<64x192xf32> to vector<64x192xbf16>
    %9 = vector.extract_strided_slice %8 {offsets = [0, 0], sizes = [64, 64], strides = [1, 1]} : vector<64x192xbf16> to vector<64x64xbf16>
    %10 = vector.extract_strided_slice %8 {offsets = [0, 64], sizes = [64, 64], strides = [1, 1]} : vector<64x192xbf16> to vector<64x64xbf16>
    %11 = vector.extract_strided_slice %8 {offsets = [0, 128], sizes = [64, 64], strides = [1, 1]} : vector<64x192xbf16> to vector<64x64xbf16>
    %12 = tpu.iota {dimensions = array<i32: 0>} : vector<64x64xi32>
    %13 = tpu.iota {dimensions = array<i32: 1>} : vector<64x64xi32>
    %14 = arith.cmpi sle, %13, %12 : vector<64x64xi32>
    %cst_6 = arith.constant dense<0.000000e+00> : vector<64x64xf32>
    %15 = tpu.matmul %9, %10, %cst_6 {dimension_numbers = #tpu.dot_dimension_numbers<[1], [1], [0], [0], [0, 0, 1, 0], [], []>} : vector<64x64xbf16>, vector<64x64xbf16>, vector<64x64xf32> -> vector<64x64xf32>
    %cst_7 = arith.constant -1.000000e+30 : f32
    %16 = vector.broadcast %cst_7 : f32 to vector<64x64xf32>
    %17 = arith.select %14, %15, %16 : vector<64x64xi1>, vector<64x64xf32>
    %cst_8 = arith.constant dense<0xFF800000> : vector<64xf32>
    %18 = vector.multi_reduction <maximumf>, %17, %cst_8 [1] : vector<64x64xf32> to vector<64xf32>
    %19 = vector.shape_cast %18 : vector<64xf32> to vector<64x1xf32>
    %20 = vector.broadcast %19 : vector<64x1xf32> to vector<64x64xf32>
    %21 = arith.subf %17, %20 : vector<64x64xf32>
    %22 = math.exp %21 : vector<64x64xf32>
    %cst_9 = arith.constant dense<0.000000e+00> : vector<64xf32>
    %23 = vector.multi_reduction <add>, %22, %cst_9 [1] : vector<64x64xf32> to vector<64xf32>
    %24 = vector.shape_cast %23 : vector<64xf32> to vector<64x1xf32>
    %25 = tpu.reciprocal %24 {approx = true} : vector<64x1xf32> -> vector<64x1xf32>
    %26 = vector.broadcast %25 : vector<64x1xf32> to vector<64x64xf32>
    %27 = arith.mulf %22, %26 : vector<64x64xf32>
    %28 = arith.truncf %27 : vector<64x64xf32> to vector<64x64xbf16>
    %cst_10 = arith.constant dense<0.000000e+00> : vector<64x64xf32>
    %29 = tpu.matmul %28, %11, %cst_10 {dimension_numbers = #tpu.dot_dimension_numbers<[1], [0], [0], [1], [0, 0, 1, 1], [], []>} : vector<64x64xbf16>, vector<64x64xbf16>, vector<64x64xf32> -> vector<64x64xf32>
    %c0_11 = arith.constant 0 : index
    %c0_12 = arith.constant 0 : index
    %30 = vector.load %arg7[%c0_11, %c0_12] : memref<64x384xf32, #tpu.memory_space<vmem>>, vector<64x384xf32>
    %31 = arith.truncf %29 : vector<64x64xf32> to vector<64x64xbf16>
    %c0_13 = arith.constant 0 : index
    %c0_14 = arith.constant 0 : index
    %c0_15 = arith.constant 0 : index
    %32 = vector.load %arg4[%c0_13, %c0_14, %c0_15] : memref<1x64x384xbf16, #tpu.memory_space<vmem>>, vector<1x64x384xbf16>
    %33 = vector.shape_cast %32 : vector<1x64x384xbf16> to vector<64x384xbf16>
    %cst_16 = arith.constant dense<0.000000e+00> : vector<64x384xf32>
    %34 = tpu.matmul %31, %33, %cst_16 {dimension_numbers = #tpu.dot_dimension_numbers<[1], [0], [0], [1], [0, 0, 1, 1], [], []>} : vector<64x64xbf16>, vector<64x384xbf16>, vector<64x384xf32> -> vector<64x384xf32>
    %35 = arith.addf %30, %34 : vector<64x384xf32>
    %c0_17 = arith.constant 0 : index
    %c0_18 = arith.constant 0 : index
    %36 = vector.load %arg7[%c0_17, %c0_18] : memref<64x384xf32, #tpu.memory_space<vmem>>, vector<64x384xf32>
    tpu.vector_store %arg7[%c0_17, %c0_18], %35 {strides = array<i32>} : memref<64x384xf32, #tpu.memory_space<vmem>>, vector<64x384xf32>,
    %c5_i32 = arith.constant 5 : i32
    %37 = arith.cmpi eq, %arg1, %c5_i32 : i32
    %38 = arith.extui %37 : i1 to i32
    %c0_i32_19 = arith.constant 0 : i32
    %39 = arith.cmpi ne, %38, %c0_i32_19 : i32
    scf.if %39 {
      %c0_20 = arith.constant 0 : index
      %c0_21 = arith.constant 0 : index
      %40 = vector.load %arg7[%c0_20, %c0_21] : memref<64x384xf32, #tpu.memory_space<vmem>>, vector<64x384xf32>
      %c0_22 = arith.constant 0 : index
      %c0_23 = arith.constant 0 : index
      %41 = vector.load %arg5[%c0_22, %c0_23] : memref<1x384xf32, #tpu.memory_space<vmem>>, vector<1x384xf32>
      %42 = vector.broadcast %41 : vector<1x384xf32> to vector<64x384xf32>
      %43 = arith.addf %40, %42 : vector<64x384xf32>
      %44 = arith.truncf %43 : vector<64x384xf32> to vector<64x384xbf16>
      %c0_24 = arith.constant 0 : index
      %c0_25 = arith.constant 0 : index
      %c0_26 = arith.constant 0 : index
      %45 = vector.load %arg6[%c0_24, %c0_25, %c0_26] : memref<1x64x384xbf16, #tpu.memory_space<vmem>>, vector<1x64x384xbf16>
      %46 = vector.shape_cast %45 : vector<1x64x384xbf16> to vector<64x384xbf16>
      %47 = vector.shape_cast %44 : vector<64x384xbf16> to vector<1x64x384xbf16>
      tpu.vector_store %arg6[%c0_24, %c0_25, %c0_26], %47 {strides = array<i32>} : memref<1x64x384xbf16, #tpu.memory_space<vmem>>, vector<1x64x384xbf16>,
    } else {
    }
    return
  }
  func.func @transform_0(%arg0: i32, %arg1: i32) -> (i32, i32, i32) {
    %c0_i32 = arith.constant 0 : i32
    %c0_i32_0 = arith.constant 0 : i32
    %c0_i32_1 = arith.constant 0 : i32
    return %arg0, %c0_i32, %c0_i32_0 : i32, i32, i32
  }
  func.func @transform_1(%arg0: i32, %arg1: i32) -> (i32, i32, i32) {
    %c0_i32 = arith.constant 0 : i32
    %c0_i32_0 = arith.constant 0 : i32
    %c0_i32_1 = arith.constant 0 : i32
    return %arg1, %c0_i32, %c0_i32_0 : i32, i32, i32
  }
  func.func @transform_2(%arg0: i32, %arg1: i32) -> (i32, i32, i32) {
    %c0_i32 = arith.constant 0 : i32
    %c0_i32_0 = arith.constant 0 : i32
    %c0_i32_1 = arith.constant 0 : i32
    return %arg1, %c0_i32, %c0_i32_0 : i32, i32, i32
  }
  func.func @transform_3(%arg0: i32, %arg1: i32) -> (i32, i32) {
    %c0_i32 = arith.constant 0 : i32
    %c0_i32_0 = arith.constant 0 : i32
    %c0_i32_1 = arith.constant 0 : i32
    return %c0_i32, %c0_i32_0 : i32, i32
  }
  func.func @transform_4(%arg0: i32, %arg1: i32) -> (i32, i32, i32) {
    %c0_i32 = arith.constant 0 : i32
    %c0_i32_0 = arith.constant 0 : i32
    %c0_i32_1 = arith.constant 0 : i32
    return %arg0, %c0_i32, %c0_i32_0 : i32, i32, i32
  }
}

</mosaic_0001>

<llo_original>
// kernel: multi_head_attention.1
$region0: #{multi_head_attention.1}
  #allocation0 [shape = 'u32[]', space=smem, size = 0x4, offset = 0x4, fixed_abs, tag = 'smem constant byte address 0x4 - core index']
  #allocation1 [shape = 'u32[144,128]{1,0:T(1,128)}', space=vmem, size = 0x12000, scoped, tag = 'internal scratch']
  #allocation2 [shape = 'f32[64,384]{1,0:T(8,128)}', space=vmem, size = 0x18000, scoped, tag = 'scratch operand']
  %s0 = inlined_call_operand.vmem [shape: bf16[2,64,384], index: 0, kind: input, shape index: {}]
  %s1 = inlined_call_operand.vmem [shape: bf16[6,384,192], index: 1, kind: input, shape index: {}]
  %s2 = inlined_call_operand.vmem [shape: bf16[6,64,384], index: 2, kind: input, shape index: {}]
  %s3 = inlined_call_operand.vmem [shape: f32[1,384], index: 3, kind: input, shape index: {}]
  %s4 = inlined_call_operand.hbm [shape: bf16[2,64,384], index: 4, kind: output, shape index: {}]
  %s5 = sld [smem:[#allocation0]]
  $region57: #{multi_head_attention.1} parent=0
    _
  %s7 = ssub.s32 1, %s5
  %s8 = scalar_select 0, %s7, %s5
  $region1: #{multi_head_attention.1} parent=0
    #allocation3 [shape = 'u8[98304]{0}', space=vmem, size = 0x18000, scoped, tag = 'output window, operand 0']
    #allocation4 [shape = 's32[2]{0}', space=sflag, size = 0x8, scoped, tag = 'scoped memory for multi_head_attention.1']
    %9 = vsyncpa [#allocation4], 0
    %s10 = scalar_lea.sflag [#allocation4], 1
    %11 = vsyncpa %s10, 0
    loop: start=0, step=1, limit=14
    $region2: #{multi_head_attention.1} parent=1 // loop_pre_header
      _
    $region3: #{multi_head_attention.1} parent=1 // loop_header
      %s13 = sphi 0, %s17
      %p14 = scmp.ge.s32.totalorder %s13, 14
      %s20 = sphi 0, %s32
      %s21 = sphi 0, %s28
      %s22 = sphi 0, %s20
      %s23 = sphi 0, %s21
      %s24 = sphi 0, %s22
      %s25 = sphi 0, %s23
      %s35 = sphi 0, %s37
      %s38 = sphi 0, %s35
      %s39 = sphi 0, %s38
      %s55 = sphi 0, %s39
      %s61 = sphi 0, %s63
      %s64 = sphi 0, %s61
      %s65 = sphi 0, %s64
      %s81 = sphi 0, %s65
      %s87 = sphi 0, %s89
      %s90 = sphi 0, %s87
      %s91 = sphi 0, %s90
      %s107 = sphi 0, %s91
      %s111 = sphi 0, %s111
      %s113 = sphi 0, %s111
      %s114 = sphi 0, %s113
      %s128 = sphi 0, %s114
      %s134 = sphi 0, %s136
      %s137 = sphi 0, %s134
      %s138 = sphi 0, %s137
      %s154 = sphi 0, %s138
    $region4: #{multi_head_attention.1} parent=1 // loop_header_branch
      %16 = sbr.rel (%p14) target = $region8
    $region5: #{multi_head_attention.1} parent=1 // loop_body
      %s18 = ssub.s32 %s13, 1
      %s19 = ssub.s32 %s13, 2
      %s26 = sadd.s32 1, %s21
      %p27 = scmp.ge.s32.totalorder %s26, 6
      %s28 = scalar_select %p27, 0, %s26
      %s29 = sadd.s32 1, %s20
      %s30 = scalar_select %p27, %s29, %s20
      %p31 = scmp.ge.s32.totalorder %s30, 2
      %s32 = scalar_select %p31, 0, %s30
      %s33 = ssub.s32 %s20, %s32
      %p34 = scmp.eq.s32.totalorder %s33, 0
      %s36 = sadd.s32 %s35, 1
      %s37 = scalar_select %p34, %s35, %s36
      %p40 = pneg %p34
      %p41 = scmp.eq.s32.totalorder %s13, 11
      %p42 = por %p40, %p41
      %p43 = scmp.ne.s32.totalorder %s35, %s38
      %p44 = scmp.eq.s32.totalorder %s13, 0
      %p45 = por %p43, %p44
      %p46 = scmp.ne.s32.totalorder %s35, %s38
      %p47 = scmp.eq.s32.totalorder %s18, 11
      %p48 = por %p46, %p47
      %p49 = scmp.ne.s32.totalorder %s38, %s39
      %p50 = scmp.eq.s32.totalorder %s18, 0
      %p51 = por %p49, %p50
      %p52 = scmp.ne.s32.totalorder %s38, %s39
      %p53 = scmp.eq.s32.totalorder %s19, 11
      %p54 = por %p52, %p53
      %p56 = scmp.ne.s32.totalorder %s39, %s55
      %p57 = scmp.eq.s32.totalorder %s19, 0
      %p58 = por %p56, %p57
      %s59 = ssub.s32 %s21, %s28
      %p60 = scmp.eq.s32.totalorder %s59, 0
      %s62 = sadd.s32 %s61, 1
      %s63 = scalar_select %p60, %s61, %s62
      %p66 = pneg %p60
      %p67 = scmp.eq.s32.totalorder %s13, 11
      %p68 = por %p66, %p67
      %p69 = scmp.ne.s32.totalorder %s61, %s64
      %p70 = scmp.eq.s32.totalorder %s13, 0
      %p71 = por %p69, %p70
      %p72 = scmp.ne.s32.totalorder %s61, %s64
      %p73 = scmp.eq.s32.totalorder %s18, 11
      %p74 = por %p72, %p73
      %p75 = scmp.ne.s32.totalorder %s64, %s65
      %p76 = scmp.eq.s32.totalorder %s18, 0
      %p77 = por %p75, %p76
      %p78 = scmp.ne.s32.totalorder %s64, %s65
      %p79 = scmp.eq.s32.totalorder %s19, 11
      %p80 = por %p78, %p79
      %p82 = scmp.ne.s32.totalorder %s65, %s81
      %p83 = scmp.eq.s32.totalorder %s19, 0
      %p84 = por %p82, %p83
      %s85 = ssub.s32 %s21, %s28
      %p86 = scmp.eq.s32.totalorder %s85, 0
      %s88 = sadd.s32 %s87, 1
      %s89 = scalar_select %p86, %s87, %s88
      %p92 = pneg %p86
      %p93 = scmp.eq.s32.totalorder %s13, 11
      %p94 = por %p92, %p93
      %p95 = scmp.ne.s32.totalorder %s87, %s90
      %p96 = scmp.eq.s32.totalorder %s13, 0
      %p97 = por %p95, %p96
      %p98 = scmp.ne.s32.totalorder %s87, %s90
      %p99 = scmp.eq.s32.totalorder %s18, 11
      %p100 = por %p98, %p99
      %p101 = scmp.ne.s32.totalorder %s90, %s91
      %p102 = scmp.eq.s32.totalorder %s18, 0
      %p103 = por %p101, %p102
      %p104 = scmp.ne.s32.totalorder %s90, %s91
      %p105 = scmp.eq.s32.totalorder %s19, 11
      %p106 = por %p104, %p105
      %p108 = scmp.ne.s32.totalorder %s91, %s107
      %p109 = scmp.eq.s32.totalorder %s19, 0
      %p110 = por %p108, %p109
      %s112 = sadd.s32 %s111, 1
      %p115 = scmp.eq.s32.totalorder %s13, 11
      %p116 = scmp.ne.s32.totalorder %s111, %s113
      %p117 = scmp.eq.s32.totalorder %s13, 0
      %p118 = por %p116, %p117
      %p119 = scmp.ne.s32.totalorder %s111, %s113
      %p120 = scmp.eq.s32.totalorder %s18, 11
      %p121 = por %p119, %p120
      %p122 = scmp.ne.s32.totalorder %s113, %s114
      %p123 = scmp.eq.s32.totalorder %s18, 0
      %p124 = por %p122, %p123
      %p125 = scmp.ne.s32.totalorder %s113, %s114
      %p126 = scmp.eq.s32.totalorder %s19, 11
      %p127 = por %p125, %p126
      %p129 = scmp.ne.s32.totalorder %s114, %s128
      %p130 = scmp.eq.s32.totalorder %s19, 0
      %p131 = por %p129, %p130
      %s132 = ssub.s32 %s20, %s32
      %p133 = scmp.eq.s32.totalorder %s132, 0
      %s135 = sadd.s32 %s134, 1
      %s136 = scalar_select %p133, %s134, %s135
      %p139 = pneg %p133
      %p140 = scmp.eq.s32.totalorder %s13, 11
      %p141 = por %p139, %p140
      %p142 = scmp.ne.s32.totalorder %s134, %s137
      %p143 = scmp.eq.s32.totalorder %s13, 0
      %p144 = por %p142, %p143
      %p145 = scmp.ne.s32.totalorder %s134, %s137
      %p146 = scmp.eq.s32.totalorder %s18, 11
      %p147 = por %p145, %p146
      %p148 = scmp.ne.s32.totalorder %s137, %s138
      %p149 = scmp.eq.s32.totalorder %s18, 0
      %p150 = por %p148, %p149
      %p151 = scmp.ne.s32.totalorder %s137, %s138
      %p152 = scmp.eq.s32.totalorder %s19, 11
      %p153 = por %p151, %p152
      %p155 = scmp.ne.s32.totalorder %s138, %s154
      %p156 = scmp.eq.s32.totalorder %s19, 0
      %p157 = por %p155, %p156
      %p158 = scmp.le.s32.totalorder 1, %s13
      %p159 = scmp.lt.s32.totalorder %s13, 13
      %p160 = pnand %p158, %p159
      %p161 = pneg %p160
      // Predicated region
      $region9: #{multi_head_attention.1} parent=5 // pred_check
        _
      $region10: #{multi_head_attention.1} parent=5 // pred_check_branch
        %163 = sbr.rel (%p160) target = $region12
      $region11: #{multi_head_attention.1} parent=5 // pred_region
        %s164 = ssub.s32 %s13, 1
        // Predicated region
        $region13: #{multi_head_attention.1} parent=11 // pred_check
          %p165 = pneg %p124
        $region14: #{multi_head_attention.1} parent=11 // pred_check_branch
          %167 = sbr.rel (%p165) target = $region16
        $region15: #{multi_head_attention.1} parent=11 // pred_region
          _
        $region16: #{multi_head_attention.1} parent=11 // pred_fallthru
          _
      $region12: #{multi_head_attention.1} parent=5 // pred_fallthru
        _
      %p168 = scmp.lt.s32.totalorder %s13, 12
      // Predicated region
      $region17: #{multi_head_attention.1} parent=5 // pred_check
        %p169 = pneg %p168
      $region18: #{multi_head_attention.1} parent=5 // pred_check_branch
        %171 = sbr.rel (%p169) target = $region20
      $region19: #{multi_head_attention.1} parent=5 // pred_region
        // Predicated region
        $region21: #{multi_head_attention.1} parent=19 // pred_check
          %p172 = pneg %p45
        $region22: #{multi_head_attention.1} parent=19 // pred_check_branch
          %174 = sbr.rel (%p172) target = $region24
        $region23: #{multi_head_attention.1} parent=19 // pred_region
          %p175 = scmp.lt.s32.totalorder %s20, 1
          %s176 = scalar_select %p175, %s20, 1
          %s177 = smul.addr %s176, 24
          %s178 = smul.addr %s177, 4
          %s179 = scalar_lea.vmem %s0, %s178
        $region24: #{multi_head_attention.1} parent=19 // pred_fallthru
          _
        // Predicated region
        $region25: #{multi_head_attention.1} parent=19 // pred_check
          %p180 = pneg %p71
        $region26: #{multi_head_attention.1} parent=19 // pred_check_branch
          %182 = sbr.rel (%p180) target = $region28
        $region27: #{multi_head_attention.1} parent=19 // pred_region
          %p183 = scmp.lt.s32.totalorder %s21, 5
          %s184 = scalar_select %p183, %s21, 5
          %s185 = smul.addr %s184, 96
          %s186 = smul.addr %s185, 4
          %s187 = scalar_lea.vmem %s1, %s186
        $region28: #{multi_head_attention.1} parent=19 // pred_fallthru
          _
        // Predicated region
        $region29: #{multi_head_attention.1} parent=19 // pred_check
          %p188 = pneg %p97
        $region30: #{multi_head_attention.1} parent=19 // pred_check_branch
          %190 = sbr.rel (%p188) target = $region32
        $region31: #{multi_head_attention.1} parent=19 // pred_region
          %p191 = scmp.lt.s32.totalorder %s21, 5
          %s192 = scalar_select %p191, %s21, 5
          %s193 = smul.addr %s192, 24
          %s194 = smul.addr %s193, 4
          %s195 = scalar_lea.vmem %s2, %s194
        $region32: #{multi_head_attention.1} parent=19 // pred_fallthru
          _
      $region20: #{multi_head_attention.1} parent=5 // pred_fallthru
        _
      %p196 = scmp.le.s32.totalorder 1, %s13
      %p197 = scmp.lt.s32.totalorder %s13, 13
      %p198 = pnand %p196, %p197
      %p199 = pneg %p198
      // Predicated region
      $region33: #{multi_head_attention.1} parent=5 // pred_check
        _
      $region34: #{multi_head_attention.1} parent=5 // pred_check_branch
        %201 = sbr.rel (%p198) target = $region36
      $region35: #{multi_head_attention.1} parent=5 // pred_region
        %s202 = ssub.s32 %s13, 1
        %p203 = scmp.lt.s32.totalorder %s22, 1
        %s204 = scalar_select %p203, %s22, 1
        %s205 = smul.addr %s204, 24
        %s206 = smul.addr %s205, 4
        %s207 = scalar_lea.vmem %s0, %s206
        %p208 = pneg %p51
        %p209 = pneg %p48
        %p210 = scmp.lt.s32.totalorder %s23, 5
        %s211 = scalar_select %p210, %s23, 5
        %s212 = smul.addr %s211, 96
        %s213 = smul.addr %s212, 4
        %s214 = scalar_lea.vmem %s1, %s213
        %p215 = pneg %p77
        %p216 = pneg %p74
        %p217 = scmp.lt.s32.totalorder %s23, 5
        %s218 = scalar_select %p217, %s23, 5
        %s219 = smul.addr %s218, 24
        %s220 = smul.addr %s219, 4
        %s221 = scalar_lea.vmem %s2, %s220
        %p222 = pneg %p103
        %p223 = pneg %p100
        %p224 = pneg %p124
        %p225 = pneg %p121
        %p226 = pneg %p150
        %p227 = pneg %p147
        %s228 = sand.u32 %s137, 1
        %s229 = scalar_lea.sflag [#allocation4], %s228
        %s230 = sand.u32 %s137, 1
        %s231 = smul.addr %s230, 96
        %s232 = scalar_lea.vmem [#allocation3], %s231
        %p233 = scmp.lt.s32.totalorder %s22, 1
        %s234 = scalar_select %p233, %s22, 1
        %s235 = smul.addr %s234, 24
        %s236 = smul.addr %s235, 4
        %s237 = scalar_lea.vmem %s0, %s236
        %p238 = scmp.lt.s32.totalorder %s23, 5
        %s239 = scalar_select %p238, %s23, 5
        %s240 = smul.addr %s239, 96
        %s241 = smul.addr %s240, 4
        %s242 = scalar_lea.vmem %s1, %s241
        %p243 = scmp.lt.s32.totalorder %s23, 5
        %s244 = scalar_select %p243, %s23, 5
        %s245 = smul.addr %s244, 24
        %s246 = smul.addr %s245, 4
        %s247 = scalar_lea.vmem %s2, %s246
        %p249 = scmp.eq.s32.totalorder %s23, 0
        // Predicated region
        $region37: #{multi_head_attention.1} parent=35 // pred_check
          %p250 = pneg %p249
        $region38: #{multi_head_attention.1} parent=35 // pred_check_branch
          %252 = sbr.rel (%p250) target = $region40
        $region39: #{multi_head_attention.1} parent=35 // pred_region
          %253 = vst [vmem:[#allocation2] sm:$0xff] 0.0
          %254 = vst [vmem:[#allocation2 + $0x8] sm:$0xff] 0.0
          %255 = vst [vmem:[#allocation2 + $0x10] sm:$0xff] 0.0
          %256 = vst [vmem:[#allocation2 + $0x18] sm:$0xff] 0.0
          %257 = vst [vmem:[#allocation2 + $0x20] sm:$0xff] 0.0
          %258 = vst [vmem:[#allocation2 + $0x28] sm:$0xff] 0.0
          %259 = vst [vmem:[#allocation2 + $0x30] sm:$0xff] 0.0
          %260 = vst [vmem:[#allocation2 + $0x38] sm:$0xff] 0.0
          %261 = vst [vmem:[#allocation2 + $0x40] sm:$0xff] 0.0
          %262 = vst [vmem:[#allocation2 + $0x48] sm:$0xff] 0.0
          %263 = vst [vmem:[#allocation2 + $0x50] sm:$0xff] 0.0
          %264 = vst [vmem:[#allocation2 + $0x58] sm:$0xff] 0.0
          %265 = vst [vmem:[#allocation2 + $0x60] sm:$0xff] 0.0
          %266 = vst [vmem:[#allocation2 + $0x68] sm:$0xff] 0.0
          %267 = vst [vmem:[#allocation2 + $0x70] sm:$0xff] 0.0
          %268 = vst [vmem:[#allocation2 + $0x78] sm:$0xff] 0.0
          %269 = vst [vmem:[#allocation2 + $0x80] sm:$0xff] 0.0
          %270 = vst [vmem:[#allocation2 + $0x88] sm:$0xff] 0.0
          %271 = vst [vmem:[#allocation2 + $0x90] sm:$0xff] 0.0
          %272 = vst [vmem:[#allocation2 + $0x98] sm:$0xff] 0.0
          %273 = vst [vmem:[#allocation2 + $0xa0] sm:$0xff] 0.0
          %274 = vst [vmem:[#allocation2 + $0xa8] sm:$0xff] 0.0
          %275 = vst [vmem:[#allocation2 + $0xb0] sm:$0xff] 0.0
          %276 = vst [vmem:[#allocation2 + $0xb8] sm:$0xff] 0.0
        $region40: #{multi_head_attention.1} parent=35 // pred_fallthru
          _
        %v277 = vld [vmem:[%s237] sm:$0xff]
        %v278 = vld [vmem:[%s237 + $0x8] sm:$0xf]
        %v279 = vld [vmem:[%s237 + $0xc] sm:$0xff]
        %v280 = vld [vmem:[%s237 + $0x14] sm:$0xf]
        %v281 = vld [vmem:[%s237 + $0x18] sm:$0xff]
        %v282 = vld [vmem:[%s237 + $0x20] sm:$0xf]
        %v283 = vld [vmem:[%s237 + $0x24] sm:$0xff]
        %v284 = vld [vmem:[%s237 + $0x2c] sm:$0xf]
        %v285 = vld [vmem:[%s237 + $0x30] sm:$0xff]
        %v286 = vld [vmem:[%s237 + $0x38] sm:$0xf]
        %v287 = vld [vmem:[%s237 + $0x3c] sm:$0xff]
        %v288 = vld [vmem:[%s237 + $0x44] sm:$0xf]
        %v289 = vld [vmem:[%s237 + $0x48] sm:$0xff]
        %v290 = vld [vmem:[%s237 + $0x50] sm:$0xf]
        %v291 = vld [vmem:[%s237 + $0x54] sm:$0xff]
        %v292 = vld [vmem:[%s237 + $0x5c] sm:$0xf]
        %v293 = vld [vmem:[%s242] sm:$0xff]
        %v294 = vld [vmem:[%s242 + $0x8] sm:$0xff]
        %v295 = vld [vmem:[%s242 + $0x10] sm:$0xff]
        %v296 = vld [vmem:[%s242 + $0x18] sm:$0xff]
        %v297 = vld [vmem:[%s242 + $0x20] sm:$0xff]
        %v298 = vld [vmem:[%s242 + $0x28] sm:$0xff]
        %v299 = vld [vmem:[%s242 + $0x30] sm:$0xff]
        %v300 = vld [vmem:[%s242 + $0x38] sm:$0xff]
        %v301 = vld [vmem:[%s242 + $0x40] sm:$0xff]
        %v302 = vld [vmem:[%s242 + $0x48] sm:$0xff]
        %v303 = vld [vmem:[%s242 + $0x50] sm:$0xff]
        %v304 = vld [vmem:[%s242 + $0x58] sm:$0xff]
        %v305 = vld [vmem:[%s242 + $0x60] sm:$0xff]
        %v306 = vld [vmem:[%s242 + $0x68] sm:$0xff]
        %v307 = vld [vmem:[%s242 + $0x70] sm:$0xff]
        %v308 = vld [vmem:[%s242 + $0x78] sm:$0xff]
        %v309 = vld [vmem:[%s242 + $0x80] sm:$0xff]
        %v310 = vld [vmem:[%s242 + $0x88] sm:$0xff]
        %v311 = vld [vmem:[%s242 + $0x90] sm:$0xff]
        %v312 = vld [vmem:[%s242 + $0x98] sm:$0xff]
        %v313 = vld [vmem:[%s242 + $0xa0] sm:$0xff]
        %v314 = vld [vmem:[%s242 + $0xa8] sm:$0xff]
        %v315 = vld [vmem:[%s242 + $0xb0] sm:$0xff]
        %v316 = vld [vmem:[%s242 + $0xb8] sm:$0xff]
        %v317 = vld [vmem:[%s242 + $0xc0] sm:$0xff]
        %v318 = vld [vmem:[%s242 + $0xc8] sm:$0xff]
        %v319 = vld [vmem:[%s242 + $0xd0] sm:$0xff]
        %v320 = vld [vmem:[%s242 + $0xd8] sm:$0xff]
        %v321 = vld [vmem:[%s242 + $0xe0] sm:$0xff]
        %v322 = vld [vmem:[%s242 + $0xe8] sm:$0xff]
        %v323 = vld [vmem:[%s242 + $0xf0] sm:$0xff]
        %v324 = vld [vmem:[%s242 + $0xf8] sm:$0xff]
        %v325 = vld [vmem:[%s242 + $0x100] sm:$0xff]
        %v326 = vld [vmem:[%s242 + $0x108] sm:$0xff]
        %v327 = vld [vmem:[%s242 + $0x110] sm:$0xff]
        %v328 = vld [vmem:[%s242 + $0x118] sm:$0xff]
        %v329 = vld [vmem:[%s242 + $0x120] sm:$0xff]
        %v330 = vld [vmem:[%s242 + $0x128] sm:$0xff]
        %v331 = vld [vmem:[%s242 + $0x130] sm:$0xff]
        %v332 = vld [vmem:[%s242 + $0x138] sm:$0xff]
        %v333 = vld [vmem:[%s242 + $0x140] sm:$0xff]
        %v334 = vld [vmem:[%s242 + $0x148] sm:$0xff]
        %v335 = vld [vmem:[%s242 + $0x150] sm:$0xff]
        %v336 = vld [vmem:[%s242 + $0x158] sm:$0xff]
        %v337 = vld [vmem:[%s242 + $0x160] sm:$0xff]
        %v338 = vld [vmem:[%s242 + $0x168] sm:$0xff]
        %v339 = vld [vmem:[%s242 + $0x170] sm:$0xff]
        %v340 = vld [vmem:[%s242 + $0x178] sm:$0xff]
        %v357 = vunpack.c.l.b16 %v277
        %v358 = vunpack.c.h.b16 %v277
        %v359 = vunpack.c.l.b16 %v278
        %v360 = vunpack.c.l.b16 %v279
        %v361 = vunpack.c.h.b16 %v279
        %v362 = vunpack.c.l.b16 %v280
        %v363 = vunpack.c.l.b16 %v281
        %v364 = vunpack.c.h.b16 %v281
        %v365 = vunpack.c.l.b16 %v282
        %v366 = vunpack.c.l.b16 %v283
        %v367 = vunpack.c.h.b16 %v283
        %v368 = vunpack.c.l.b16 %v284
        %v369 = vunpack.c.l.b16 %v285
        %v370 = vunpack.c.h.b16 %v285
        %v371 = vunpack.c.l.b16 %v286
        %v372 = vunpack.c.l.b16 %v287
        %v373 = vunpack.c.h.b16 %v287
        %v374 = vunpack.c.l.b16 %v288
        %v375 = vunpack.c.l.b16 %v289
        %v376 = vunpack.c.h.b16 %v289
        %v377 = vunpack.c.l.b16 %v290
        %v378 = vunpack.c.l.b16 %v291
        %v379 = vunpack.c.h.b16 %v291
        %v380 = vunpack.c.l.b16 %v292
        %v381 = vpack.c.b16 %v360, %v357
        %v382 = vpack.c.b16 %v361, %v358
        %v383 = vpack.c.b16 %v362, %v359
        %v384 = vpack.c.b16 %v366, %v363
        %v385 = vpack.c.b16 %v367, %v364
        %v386 = vpack.c.b16 %v368, %v365
        %v387 = vpack.c.b16 %v372, %v369
        %v388 = vpack.c.b16 %v373, %v370
        %v389 = vpack.c.b16 %v374, %v371
        %v390 = vpack.c.b16 %v378, %v375
        %v391 = vpack.c.b16 %v379, %v376
        %v392 = vpack.c.b16 %v380, %v377
        %v453 = vunpack.c.l.b16 %v293
        %v454 = vunpack.c.h.b16 %v293
        %v455 = vunpack.c.l.b16 %v294
        %v456 = vunpack.c.h.b16 %v294
        %v457 = vunpack.c.l.b16 %v295
        %v458 = vunpack.c.h.b16 %v295
        %v459 = vunpack.c.l.b16 %v296
        %v460 = vunpack.c.h.b16 %v296
        %v461 = vunpack.c.l.b16 %v297
        %v462 = vunpack.c.h.b16 %v297
        %v463 = vunpack.c.l.b16 %v298
        %v464 = vunpack.c.h.b16 %v298
        %v465 = vunpack.c.l.b16 %v299
        %v466 = vunpack.c.h.b16 %v299
        %v467 = vunpack.c.l.b16 %v300
        %v468 = vunpack.c.h.b16 %v300
        %v469 = vunpack.c.l.b16 %v301
        %v470 = vunpack.c.h.b16 %v301
        %v471 = vunpack.c.l.b16 %v302
        %v472 = vunpack.c.h.b16 %v302
        %v473 = vunpack.c.l.b16 %v303
        %v474 = vunpack.c.h.b16 %v303
        %v475 = vunpack.c.l.b16 %v304
        %v476 = vunpack.c.h.b16 %v304
        %v477 = vunpack.c.l.b16 %v305
        %v478 = vunpack.c.h.b16 %v305
        %v479 = vunpack.c.l.b16 %v306
        %v480 = vunpack.c.h.b16 %v306
        %v481 = vunpack.c.l.b16 %v307
        %v482 = vunpack.c.h.b16 %v307
        %v483 = vunpack.c.l.b16 %v308
        %v484 = vunpack.c.h.b16 %v308
        %v485 = vunpack.c.l.b16 %v309
        %v486 = vunpack.c.h.b16 %v309
        %v487 = vunpack.c.l.b16 %v310
        %v488 = vunpack.c.h.b16 %v310
        %v489 = vunpack.c.l.b16 %v311
        %v490 = vunpack.c.h.b16 %v311
        %v491 = vunpack.c.l.b16 %v312
        %v492 = vunpack.c.h.b16 %v312
        %v493 = vunpack.c.l.b16 %v313
        %v494 = vunpack.c.h.b16 %v313
        %v495 = vunpack.c.l.b16 %v314
        %v496 = vunpack.c.h.b16 %v314
        %v497 = vunpack.c.l.b16 %v315
        %v498 = vunpack.c.h.b16 %v315
        %v499 = vunpack.c.l.b16 %v316
        %v500 = vunpack.c.h.b16 %v316
        %v501 = vunpack.c.l.b16 %v317
        %v502 = vunpack.c.h.b16 %v317
        %v503 = vunpack.c.l.b16 %v318
        %v504 = vunpack.c.h.b16 %v318
        %v505 = vunpack.c.l.b16 %v319
        %v506 = vunpack.c.h.b16 %v319
        %v507 = vunpack.c.l.b16 %v320
        %v508 = vunpack.c.h.b16 %v320
        %v509 = vunpack.c.l.b16 %v321
        %v510 = vunpack.c.h.b16 %v321
        %v511 = vunpack.c.l.b16 %v322
        %v512 = vunpack.c.h.b16 %v322
        %v513 = vunpack.c.l.b16 %v323
        %v514 = vunpack.c.h.b16 %v323
        %v515 = vunpack.c.l.b16 %v324
        %v516 = vunpack.c.h.b16 %v324
        %v517 = vunpack.c.l.b16 %v325
        %v518 = vunpack.c.h.b16 %v325
        %v519 = vunpack.c.l.b16 %v326
        %v520 = vunpack.c.h.b16 %v326
        %v521 = vunpack.c.l.b16 %v327
        %v522 = vunpack.c.h.b16 %v327
        %v523 = vunpack.c.l.b16 %v328
        %v524 = vunpack.c.h.b16 %v328
        %v525 = vunpack.c.l.b16 %v329
        %v526 = vunpack.c.h.b16 %v329
        %v527 = vunpack.c.l.b16 %v330
        %v528 = vunpack.c.h.b16 %v330
        %v529 = vunpack.c.l.b16 %v331
        %v530 = vunpack.c.h.b16 %v331
        %v531 = vunpack.c.l.b16 %v332
        %v532 = vunpack.c.h.b16 %v332
        %v533 = vunpack.c.l.b16 %v333
        %v534 = vunpack.c.h.b16 %v333
        %v535 = vunpack.c.l.b16 %v334
        %v536 = vunpack.c.h.b16 %v334
        %v537 = vunpack.c.l.b16 %v335
        %v538 = vunpack.c.h.b16 %v335
        %v539 = vunpack.c.l.b16 %v336
        %v540 = vunpack.c.h.b16 %v336
        %v541 = vunpack.c.l.b16 %v337
        %v542 = vunpack.c.h.b16 %v337
        %v543 = vunpack.c.l.b16 %v338
        %v544 = vunpack.c.h.b16 %v338
        %v545 = vunpack.c.l.b16 %v339
        %v546 = vunpack.c.h.b16 %v339
        %v547 = vunpack.c.l.b16 %v340
        %v548 = vunpack.c.h.b16 %v340
        %v549 = vpack.c.b16 %v455, %v453
        %v550 = vpack.c.b16 %v456, %v454
        %v551 = vpack.c.b16 %v459, %v457
        %v552 = vpack.c.b16 %v460, %v458
        %v553 = vpack.c.b16 %v463, %v461
        %v554 = vpack.c.b16 %v464, %v462
        %v555 = vpack.c.b16 %v467, %v465
        %v556 = vpack.c.b16 %v468, %v466
        %v557 = vpack.c.b16 %v471, %v469
        %v558 = vpack.c.b16 %v472, %v470
        %v559 = vpack.c.b16 %v475, %v473
        %v560 = vpack.c.b16 %v476, %v474
        %v561 = vpack.c.b16 %v479, %v477
        %v562 = vpack.c.b16 %v480, %v478
        %v563 = vpack.c.b16 %v483, %v481
        %v564 = vpack.c.b16 %v484, %v482
        %v565 = vpack.c.b16 %v487, %v485
        %v566 = vpack.c.b16 %v488, %v486
        %v567 = vpack.c.b16 %v491, %v489
        %v568 = vpack.c.b16 %v492, %v490
        %v569 = vpack.c.b16 %v495, %v493
        %v570 = vpack.c.b16 %v496, %v494
        %v571 = vpack.c.b16 %v499, %v497
        %v572 = vpack.c.b16 %v500, %v498
        %v573 = vpack.c.b16 %v503, %v501
        %v574 = vpack.c.b16 %v504, %v502
        %v575 = vpack.c.b16 %v507, %v505
        %v576 = vpack.c.b16 %v508, %v506
        %v577 = vpack.c.b16 %v511, %v509
        %v578 = vpack.c.b16 %v512, %v510
        %v579 = vpack.c.b16 %v515, %v513
        %v580 = vpack.c.b16 %v516, %v514
        %v581 = vpack.c.b16 %v519, %v517
        %v582 = vpack.c.b16 %v520, %v518
        %v583 = vpack.c.b16 %v523, %v521
        %v584 = vpack.c.b16 %v524, %v522
        %v585 = vpack.c.b16 %v527, %v525
        %v586 = vpack.c.b16 %v528, %v526
        %v587 = vpack.c.b16 %v531, %v529
        %v588 = vpack.c.b16 %v532, %v530
        %v589 = vpack.c.b16 %v535, %v533
        %v590 = vpack.c.b16 %v536, %v534
        %v591 = vpack.c.b16 %v539, %v537
        %v592 = vpack.c.b16 %v540, %v538
        %v593 = vpack.c.b16 %v543, %v541
        %v594 = vpack.c.b16 %v544, %v542
        %v595 = vpack.c.b16 %v547, %v545
        %v596 = vpack.c.b16 %v548, %v546
        %645 = vmatprep.subr.bf16.mxu0 %v550
        %646 = vmatpush1.bf16.msra.mxu0 %v549
        %647 = vmatprep.subr.bf16.mxu0 %v552
        %648 = vmatpush1.bf16.msra.mxu0 %v551
        %649 = vmatprep.subr.bf16.mxu0 %v554
        %650 = vmatpush1.bf16.msra.mxu0 %v553
        %651 = vmatprep.subr.bf16.mxu0 %v556
        %652 = vmatpush1.bf16.msra.mxu0 %v555
        %653 = vmatprep.subr.bf16.mxu0 %v558
        %654 = vmatpush1.bf16.msra.mxu0 %v557
        %655 = vmatprep.subr.bf16.mxu0 %v560
        %656 = vmatpush1.bf16.msra.mxu0 %v559
        %657 = vmatprep.subr.bf16.mxu0 %v562
        %658 = vmatpush1.bf16.msra.mxu0 %v561
        %659 = vmatprep.subr.bf16.mxu0 %v564
        %660 = vmatpush1.bf16.msra.mxu0 %v563
        %661 = vmatprep.subr.bf16.mxu0 %v566
        %662 = vmatpush1.bf16.msra.mxu0 %v565
        %663 = vmatprep.subr.bf16.mxu0 %v568
        %664 = vmatpush1.bf16.msra.mxu0 %v567
        %665 = vmatprep.subr.bf16.mxu0 %v570
        %666 = vmatpush1.bf16.msra.mxu0 %v569
        %667 = vmatprep.subr.bf16.mxu0 %v572
        %668 = vmatpush1.bf16.msra.mxu0 %v571
        %669 = vmatprep.subr.bf16.mxu0 %v574
        %670 = vmatpush1.bf16.msra.mxu0 %v573
        %671 = vmatprep.subr.bf16.mxu0 %v576
        %672 = vmatpush1.bf16.msra.mxu0 %v575
        %673 = vmatprep.subr.bf16.mxu0 %v578
        %674 = vmatpush1.bf16.msra.mxu0 %v577
        %675 = vmatprep.subr.bf16.mxu0 %v580
        %676 = vmatpush1.bf16.msra.mxu0 %v579
        %677 = vmatprep.mubr.bf16.mxu0 %v382
        %678 = vmatmul.mubr.bf16.gmra.mrb[0].mxu0 %v381
        %v679 = vpop.f32.mrb[0].mxu0
        %v680 = vadd.f32 0.0, %v679
        %v681 = vpop.f32.mrb[0].mxu0
        %v682 = vadd.f32 0.0, %v681
        %v683 = vpop.f32.mrb[0].mxu0
        %v684 = vadd.f32 0.0, %v683
        %v685 = vpop.f32.mrb[0].mxu0
        %v686 = vadd.f32 0.0, %v685
        %687 = vmatprep.mubr.bf16.mxu0 %v385
        %688 = vmatmul.mubr.bf16.gmra.mrb[0].mxu0 %v384
        %v689 = vpop.f32.mrb[0].mxu0
        %v690 = vadd.f32 0.0, %v689
        %v691 = vpop.f32.mrb[0].mxu0
        %v692 = vadd.f32 0.0, %v691
        %v693 = vpop.f32.mrb[0].mxu0
        %v694 = vadd.f32 0.0, %v693
        %v695 = vpop.f32.mrb[0].mxu0
        %v696 = vadd.f32 0.0, %v695
        %697 = vmatprep.mubr.bf16.mxu0 %v388
        %698 = vmatmul.mubr.bf16.gmra.mrb[0].mxu0 %v387
        %v699 = vpop.f32.mrb[0].mxu0
        %v700 = vadd.f32 0.0, %v699
        %v701 = vpop.f32.mrb[0].mxu0
        %v702 = vadd.f32 0.0, %v701
        %v703 = vpop.f32.mrb[0].mxu0
        %v704 = vadd.f32 0.0, %v703
        %v705 = vpop.f32.mrb[0].mxu0
        %v706 = vadd.f32 0.0, %v705
        %707 = vmatprep.mubr.bf16.mxu0 %v391
        %708 = vmatmul.mubr.bf16.gmra.mrb[0].mxu0 %v390
        %v709 = vpop.f32.mrb[0].mxu0
        %v710 = vadd.f32 0.0, %v709
        %v711 = vpop.f32.mrb[0].mxu0
        %v712 = vadd.f32 0.0, %v711
        %v713 = vpop.f32.mrb[0].mxu0
        %v714 = vadd.f32 0.0, %v713
        %v715 = vpop.f32.mrb[0].mxu0
        %v716 = vadd.f32 0.0, %v715
        %717 = vdwg.mxu0
        %718 = vmatprep.subr.bf16.mxu0 %v582
        %719 = vmatpush1.bf16.msra.mxu0 %v581
        %720 = vmatprep.subr.bf16.mxu0 %v584
        %721 = vmatpush1.bf16.msra.mxu0 %v583
        %722 = vmatprep.subr.bf16.mxu0 %v586
        %723 = vmatpush1.bf16.msra.mxu0 %v585
        %724 = vmatprep.subr.bf16.mxu0 %v588
        %725 = vmatpush1.bf16.msra.mxu0 %v587
        %726 = vmatprep.subr.bf16.mxu0 %v590
        %727 = vmatpush1.bf16.msra.mxu0 %v589
        %728 = vmatprep.subr.bf16.mxu0 %v592
        %729 = vmatpush1.bf16.msra.mxu0 %v591
        %730 = vmatprep.subr.bf16.mxu0 %v594
        %731 = vmatpush1.bf16.msra.mxu0 %v593
        %732 = vmatprep.subr.bf16.mxu0 %v596
        %733 = vmatpush1.bf16.msra.mxu0 %v595
        %734 = vmatprep.subr.bf16.mxu0 0
        %735 = vmatpush1.bf16.msra.mxu0 0
        %736 = vmatprep.subr.bf16.mxu0 0
        %737 = vmatpush1.bf16.msra.mxu0 0
        %738 = vmatprep.subr.bf16.mxu0 0
        %739 = vmatpush1.bf16.msra.mxu0 0
        %740 = vmatprep.subr.bf16.mxu0 0
        %741 = vmatpush1.bf16.msra.mxu0 0
        %742 = vmatprep.subr.bf16.mxu0 0
        %743 = vmatpush1.bf16.msra.mxu0 0
        %744 = vmatprep.subr.bf16.mxu0 0
        %745 = vmatpush1.bf16.msra.mxu0 0
        %746 = vmatprep.subr.bf16.mxu0 0
        %747 = vmatpush1.bf16.msra.mxu0 0
        %748 = vmatprep.subr.bf16.mxu0 0
        %749 = vmatpush1.bf16.msra.mxu0 0
        %750 = vmatprep.mubr.bf16.mxu0 0
        %751 = vmatmul.mubr.bf16.gmra.mrb[0].mxu0 %v383
        %v752 = vpop.f32.mrb[0].mxu0
        %v753 = vadd.f32 %v680, %v752
        %v754 = vpop.f32.mrb[0].mxu0
        %v755 = vadd.f32 %v682, %v754
        %v756 = vpop.f32.mrb[0].mxu0
        %v757 = vadd.f32 %v684, %v756
        %v758 = vpop.f32.mrb[0].mxu0
        %v759 = vadd.f32 %v686, %v758
        %760 = vmatprep.mubr.bf16.mxu0 0
        %761 = vmatmul.mubr.bf16.gmra.mrb[0].mxu0 %v386
        %v762 = vpop.f32.mrb[0].mxu0
        %v763 = vadd.f32 %v690, %v762
        %v764 = vpop.f32.mrb[0].mxu0
        %v765 = vadd.f32 %v692, %v764
        %v766 = vpop.f32.mrb[0].mxu0
        %v767 = vadd.f32 %v694, %v766
        %v768 = vpop.f32.mrb[0].mxu0
        %v769 = vadd.f32 %v696, %v768
        %770 = vmatprep.mubr.bf16.mxu0 0
        %771 = vmatmul.mubr.bf16.gmra.mrb[0].mxu0 %v389
        %v772 = vpop.f32.mrb[0].mxu0
        %v773 = vadd.f32 %v700, %v772
        %v774 = vpop.f32.mrb[0].mxu0
        %v775 = vadd.f32 %v702, %v774
        %v776 = vpop.f32.mrb[0].mxu0
        %v777 = vadd.f32 %v704, %v776
        %v778 = vpop.f32.mrb[0].mxu0
        %v779 = vadd.f32 %v706, %v778
        %780 = vmatprep.mubr.bf16.mxu0 0
        %781 = vmatmul.mubr.bf16.gmra.mrb[0].mxu0 %v392
        %v782 = vpop.f32.mrb[0].mxu0
        %v783 = vadd.f32 %v710, %v782
        %v784 = vpop.f32.mrb[0].mxu0
        %v785 = vadd.f32 %v712, %v784
        %v786 = vpop.f32.mrb[0].mxu0
        %v787 = vadd.f32 %v714, %v786
        %v788 = vpop.f32.mrb[0].mxu0
        %v789 = vadd.f32 %v716, %v788
        %790 = vdwg.mxu0
        %v791 = vpack.c.bf16 %v757, %v753
        %v792 = vpack.c.bf16 %v759, %v755
        %v793 = vpack.c.bf16 %v767, %v763
        %v794 = vpack.c.bf16 %v769, %v765
        %v795 = vpack.c.bf16 %v777, %v773
        %v796 = vpack.c.bf16 %v779, %v775
        %v797 = vpack.c.bf16 %v787, %v783
        %v798 = vpack.c.bf16 %v789, %v785
        %v799 = vlaneseq
        %v800 = vshrl.u32 %v799, 7
        %v801 = vadd.s32 %v800, 8
        %v802 = vadd.s32 %v800, 16
        %v803 = vadd.s32 %v800, 24
        %v804 = vadd.s32 %v800, 32
        %v805 = vadd.s32 %v800, 40
        %v806 = vadd.s32 %v800, 48
        %v807 = vadd.s32 %v800, 56
        %v808 = vlaneseq
        %v809 = vand.u32 %v808, 127
        %vm810 = vcmp.le.s32.totalorder %v809, %v800
        %vm811 = vcmp.le.s32.totalorder %v809, %v801
        %vm812 = vcmp.le.s32.totalorder %v809, %v802
        %vm813 = vcmp.le.s32.totalorder %v809, %v803
        %vm814 = vcmp.le.s32.totalorder %v809, %v804
        %vm815 = vcmp.le.s32.totalorder %v809, %v805
        %vm816 = vcmp.le.s32.totalorder %v809, %v806
        %vm817 = vcmp.le.s32.totalorder %v809, %v807
        %822 = vrot.lane.b32.xlu0 %v791, 64
        %v823 = vpop.permute.xlu0 %822
        %824 = vrot.lane.b32.xlu0 %v793, 64
        %v825 = vpop.permute.xlu0 %824
        %826 = vrot.lane.b32.xlu0 %v795, 64
        %v827 = vpop.permute.xlu0 %826
        %828 = vrot.lane.b32.xlu0 %v797, 64
        %v829 = vpop.permute.xlu0 %828
        %vm830 = vcmask 523264
        %v832 = vsel %vm830, %v791, 0
        %v835 = vsel %vm830, %v793, 0
        %v838 = vsel %vm830, %v795, 0
        %v841 = vsel %vm830, %v797, 0
        %v844 = vsel %vm830, %v823, 0
        %v847 = vsel %vm830, %v825, 0
        %v850 = vsel %vm830, %v827, 0
        %v853 = vsel %vm830, %v829, 0
        %855 = vmatprep.subr.bf16.mxu0 0
        %856 = vmatpush1.bf16.xpose.msra.mxu0 %v844
        %857 = vmatprep.subr.bf16.mxu0 0
        %858 = vmatpush1.bf16.xpose.msra.mxu0 %v847
        %859 = vmatprep.subr.bf16.mxu0 0
        %860 = vmatpush1.bf16.xpose.msra.mxu0 %v850
        %861 = vmatprep.subr.bf16.mxu0 0
        %862 = vmatpush1.bf16.xpose.msra.mxu0 %v853
        %863 = vmatprep.subr.bf16.mxu0 0
        %864 = vmatpush1.bf16.xpose.msra.mxu0 0
        %865 = vmatprep.subr.bf16.mxu0 0
        %866 = vmatpush1.bf16.xpose.msra.mxu0 0
        %867 = vmatprep.subr.bf16.mxu0 0
        %868 = vmatpush1.bf16.xpose.msra.mxu0 0
        %869 = vmatprep.subr.bf16.mxu0 0
        %870 = vmatpush1.bf16.xpose.msra.mxu0 0
        %871 = vmatprep.subr.bf16.mxu0 0
        %872 = vmatpush1.bf16.xpose.msra.mxu0 0
        %873 = vmatprep.subr.bf16.mxu0 0
        %874 = vmatpush1.bf16.xpose.msra.mxu0 0
        %875 = vmatprep.subr.bf16.mxu0 0
        %876 = vmatpush1.bf16.xpose.msra.mxu0 0
        %877 = vmatprep.subr.bf16.mxu0 0
        %878 = vmatpush1.bf16.xpose.msra.mxu0 0
        %879 = vmatprep.subr.bf16.mxu0 0
        %880 = vmatpush1.bf16.xpose.msra.mxu0 0
        %881 = vmatprep.subr.bf16.mxu0 0
        %882 = vmatpush1.bf16.xpose.msra.mxu0 0
        %883 = vmatprep.subr.bf16.mxu0 0
        %884 = vmatpush1.bf16.xpose.msra.mxu0 0
        %885 = vmatprep.subr.bf16.mxu0 0
        %886 = vmatpush1.bf16.xpose.msra.mxu0 0
        %887 = vmatprep.mubr.bf16.mxu0 0
        %888 = vmatmul.mubr.bf16.gmra.mrb[0].mxu0 %v832
        %v889 = vpop.f32.mrb[0].mxu0
        %v890 = vadd.f32 0.0, %v889
        %v891 = vpop.f32.mrb[0].mxu0
        %v892 = vpop.f32.mrb[0].mxu0
        %v893 = vadd.f32 0.0, %v892
        %v894 = vpop.f32.mrb[0].mxu0
        %895 = vmatprep.mubr.bf16.mxu0 0
        %896 = vmatmul.mubr.bf16.gmra.mrb[0].mxu0 %v835
        %v897 = vpop.f32.mrb[0].mxu0
        %v898 = vadd.f32 0.0, %v897
        %v899 = vpop.f32.mrb[0].mxu0
        %v900 = vpop.f32.mrb[0].mxu0
        %v901 = vadd.f32 0.0, %v900
        %v902 = vpop.f32.mrb[0].mxu0
        %903 = vmatprep.mubr.bf16.mxu0 0
        %904 = vmatmul.mubr.bf16.gmra.mrb[0].mxu0 %v838
        %v905 = vpop.f32.mrb[0].mxu0
        %v906 = vadd.f32 0.0, %v905
        %v907 = vpop.f32.mrb[0].mxu0
        %v908 = vpop.f32.mrb[0].mxu0
        %v909 = vadd.f32 0.0, %v908
        %v910 = vpop.f32.mrb[0].mxu0
        %911 = vmatprep.mubr.bf16.mxu0 0
        %912 = vmatmul.mubr.bf16.gmra.mrb[0].mxu0 %v841
        %v913 = vpop.f32.mrb[0].mxu0
        %v914 = vadd.f32 0.0, %v913
        %v915 = vpop.f32.mrb[0].mxu0
        %v916 = vpop.f32.mrb[0].mxu0
        %v917 = vadd.f32 0.0, %v916
        %v918 = vpop.f32.mrb[0].mxu0
        %919 = vdwg.mxu0
        %v920 = vsel %vm810, %v890, -1e+30
        %v921 = vsel %vm811, %v893, -1e+30
        %v922 = vsel %vm812, %v898, -1e+30
        %v923 = vsel %vm813, %v901, -1e+30
        %v924 = vsel %vm814, %v906, -1e+30
        %v925 = vsel %vm815, %v909, -1e+30
        %v926 = vsel %vm816, %v914, -1e+30
        %v927 = vsel %vm817, %v917, -1e+30
        %v928 = vsel %vm830, %v920, -inf
        %929 = vmax.xlane.f32.xlu0 %v928
        %v930 = vpop.xlane.xlu0 %929
        %v931 = vsel %vm830, %v921, -inf
        %932 = vmax.xlane.f32.xlu0 %v931
        %v933 = vpop.xlane.xlu0 %932
        %v934 = vsel %vm830, %v922, -inf
        %935 = vmax.xlane.f32.xlu0 %v934
        %v936 = vpop.xlane.xlu0 %935
        %v937 = vsel %vm830, %v923, -inf
        %938 = vmax.xlane.f32.xlu0 %v937
        %v939 = vpop.xlane.xlu0 %938
        %v940 = vsel %vm830, %v924, -inf
        %941 = vmax.xlane.f32.xlu0 %v940
        %v942 = vpop.xlane.xlu0 %941
        %v943 = vsel %vm830, %v925, -inf
        %944 = vmax.xlane.f32.xlu0 %v943
        %v945 = vpop.xlane.xlu0 %944
        %v946 = vsel %vm830, %v926, -inf
        %947 = vmax.xlane.f32.xlu0 %v946
        %v948 = vpop.xlane.xlu0 %947
        %v949 = vsel %vm830, %v927, -inf
        %950 = vmax.xlane.f32.xlu0 %v949
        %v951 = vpop.xlane.xlu0 %950
        %v952 = vsub.f32 %v920, %v930
        %v953 = vsub.f32 %v921, %v933
        %v954 = vsub.f32 %v922, %v936
        %v955 = vsub.f32 %v923, %v939
        %v956 = vsub.f32 %v924, %v942
        %v957 = vsub.f32 %v925, %v945
        %v958 = vsub.f32 %v926, %v948
        %v959 = vsub.f32 %v927, %v951
        %v960 = vmul.f32 %v952, 1.442695
        %v961 = vpow.pop %v960
        %v962 = vmul.f32 %v953, 1.442695
        %v963 = vpow.pop %v962
        %v964 = vmul.f32 %v954, 1.442695
        %v965 = vpow.pop %v964
        %v966 = vmul.f32 %v955, 1.442695
        %v967 = vpow.pop %v966
        %v968 = vmul.f32 %v956, 1.442695
        %v969 = vpow.pop %v968
        %v970 = vmul.f32 %v957, 1.442695
        %v971 = vpow.pop %v970
        %v972 = vmul.f32 %v958, 1.442695
        %v973 = vpow.pop %v972
        %v974 = vmul.f32 %v959, 1.442695
        %v975 = vpow.pop %v974
        %v976 = vsel %vm830, %v961, 0.0
        %977 = vadd.xlane.f32.xlu0 %v976
        %v978 = vpop.xlane.xlu0 %977
        %v979 = vsel %vm830, %v963, 0.0
        %980 = vadd.xlane.f32.xlu0 %v979
        %v981 = vpop.xlane.xlu0 %980
        %v982 = vsel %vm830, %v965, 0.0
        %983 = vadd.xlane.f32.xlu0 %v982
        %v984 = vpop.xlane.xlu0 %983
        %v985 = vsel %vm830, %v967, 0.0
        %986 = vadd.xlane.f32.xlu0 %v985
        %v987 = vpop.xlane.xlu0 %986
        %v988 = vsel %vm830, %v969, 0.0
        %989 = vadd.xlane.f32.xlu0 %v988
        %v990 = vpop.xlane.xlu0 %989
        %v991 = vsel %vm830, %v971, 0.0
        %992 = vadd.xlane.f32.xlu0 %v991
        %v993 = vpop.xlane.xlu0 %992
        %v994 = vsel %vm830, %v973, 0.0
        %995 = vadd.xlane.f32.xlu0 %v994
        %v996 = vpop.xlane.xlu0 %995
        %v997 = vsel %vm830, %v975, 0.0
        %998 = vadd.xlane.f32.xlu0 %v997
        %v999 = vpop.xlane.xlu0 %998
        %v1000 = vrcp.pop %v978
        %v1001 = vrcp.pop %v981
        %v1002 = vrcp.pop %v984
        %v1003 = vrcp.pop %v987
        %v1004 = vrcp.pop %v990
        %v1005 = vrcp.pop %v993
        %v1006 = vrcp.pop %v996
        %v1007 = vrcp.pop %v999
        %v1008 = vmul.f32 %v961, %v1000
        %v1009 = vmul.f32 %v963, %v1001
        %v1010 = vmul.f32 %v965, %v1002
        %v1011 = vmul.f32 %v967, %v1003
        %v1012 = vmul.f32 %v969, %v1004
        %v1013 = vmul.f32 %v971, %v1005
        %v1014 = vmul.f32 %v973, %v1006
        %v1015 = vmul.f32 %v975, %v1007
        %v1016 = vpack.c.bf16 %v1009, %v1008
        %v1017 = vpack.c.bf16 %v1011, %v1010
        %v1018 = vpack.c.bf16 %v1013, %v1012
        %v1019 = vpack.c.bf16 %v1015, %v1014
        %v1021 = vsel %vm830, %v1016, 0
        %v1024 = vsel %vm830, %v1017, 0
        %v1027 = vsel %vm830, %v1018, 0
        %v1030 = vsel %vm830, %v1019, 0
        %1032 = vmatprep.subr.bf16.mxu0 0
        %1033 = vmatpush1.bf16.msra.mxu0 %v792
        %1034 = vmatprep.subr.bf16.mxu0 0
        %1035 = vmatpush1.bf16.msra.mxu0 %v794
        %1036 = vmatprep.subr.bf16.mxu0 0
        %1037 = vmatpush1.bf16.msra.mxu0 %v796
        %1038 = vmatprep.subr.bf16.mxu0 0
        %1039 = vmatpush1.bf16.msra.mxu0 %v798
        %1040 = vmatprep.subr.bf16.mxu0 0
        %1041 = vmatpush1.bf16.msra.mxu0 0
        %1042 = vmatprep.subr.bf16.mxu0 0
        %1043 = vmatpush1.bf16.msra.mxu0 0
        %1044 = vmatprep.subr.bf16.mxu0 0
        %1045 = vmatpush1.bf16.msra.mxu0 0
        %1046 = vmatprep.subr.bf16.mxu0 0
        %1047 = vmatpush1.bf16.msra.mxu0 0
        %1048 = vmatprep.subr.bf16.mxu0 0
        %1049 = vmatpush1.bf16.msra.mxu0 0
        %1050 = vmatprep.subr.bf16.mxu0 0
        %1051 = vmatpush1.bf16.msra.mxu0 0
        %1052 = vmatprep.subr.bf16.mxu0 0
        %1053 = vmatpush1.bf16.msra.mxu0 0
        %1054 = vmatprep.subr.bf16.mxu0 0
        %1055 = vmatpush1.bf16.msra.mxu0 0
        %1056 = vmatprep.subr.bf16.mxu0 0
        %1057 = vmatpush1.bf16.msra.mxu0 0
        %1058 = vmatprep.subr.bf16.mxu0 0
        %1059 = vmatpush1.bf16.msra.mxu0 0
        %1060 = vmatprep.subr.bf16.mxu0 0
        %1061 = vmatpush1.bf16.msra.mxu0 0
        %1062 = vmatprep.subr.bf16.mxu0 0
        %1063 = vmatpush1.bf16.msra.mxu0 0
        %1064 = vmatprep.mubr.bf16.mxu0 0
        %1065 = vmatmul.mubr.bf16.gmra.mrb[0].mxu0 %v1021
        %v1066 = vpop.f32.mrb[0].mxu0
        %v1067 = vadd.f32 0.0, %v1066
        %v1068 = vpop.f32.mrb[0].mxu0
        %v1069 = vpop.f32.mrb[0].mxu0
        %v1070 = vadd.f32 0.0, %v1069
        %v1071 = vpop.f32.mrb[0].mxu0
        %1072 = vmatprep.mubr.bf16.mxu0 0
        %1073 = vmatmul.mubr.bf16.gmra.mrb[0].mxu0 %v1024
        %v1074 = vpop.f32.mrb[0].mxu0
        %v1075 = vadd.f32 0.0, %v1074
        %v1076 = vpop.f32.mrb[0].mxu0
        %v1077 = vpop.f32.mrb[0].mxu0
        %v1078 = vadd.f32 0.0, %v1077
        %v1079 = vpop.f32.mrb[0].mxu0
        %1080 = vmatprep.mubr.bf16.mxu0 0
        %1081 = vmatmul.mubr.bf16.gmra.mrb[0].mxu0 %v1027
        %v1082 = vpop.f32.mrb[0].mxu0
        %v1083 = vadd.f32 0.0, %v1082
        %v1084 = vpop.f32.mrb[0].mxu0
        %v1085 = vpop.f32.mrb[0].mxu0
        %v1086 = vadd.f32 0.0, %v1085
        %v1087 = vpop.f32.mrb[0].mxu0
        %1088 = vmatprep.mubr.bf16.mxu0 0
        %1089 = vmatmul.mubr.bf16.gmra.mrb[0].mxu0 %v1030
        %v1090 = vpop.f32.mrb[0].mxu0
        %v1091 = vadd.f32 0.0, %v1090
        %v1092 = vpop.f32.mrb[0].mxu0
        %v1093 = vpop.f32.mrb[0].mxu0
        %v1094 = vadd.f32 0.0, %v1093
        %v1095 = vpop.f32.mrb[0].mxu0
        %1096 = vdwg.mxu0
        %v1097 = vld [vmem:[#allocation2] sm:$0xff]
        %v1098 = vld [vmem:[#allocation2 + $0x8] sm:$0xff]
        %v1099 = vld [vmem:[#allocation2 + $0x10] sm:$0xff]
        %v1100 = vld [vmem:[#allocation2 + $0x18] sm:$0xff]
        %v1101 = vld [vmem:[#allocation2 + $0x20] sm:$0xff]
        %v1102 = vld [vmem:[#allocation2 + $0x28] sm:$0xff]
        %v1103 = vld [vmem:[#allocation2 + $0x30] sm:$0xff]
        %v1104 = vld [vmem:[#allocation2 + $0x38] sm:$0xff]
        %v1105 = vld [vmem:[#allocation2 + $0x40] sm:$0xff]
        %v1106 = vld [vmem:[#allocation2 + $0x48] sm:$0xff]
        %v1107 = vld [vmem:[#allocation2 + $0x50] sm:$0xff]
        %v1108 = vld [vmem:[#allocation2 + $0x58] sm:$0xff]
        %v1109 = vld [vmem:[#allocation2 + $0x60] sm:$0xff]
        %v1110 = vld [vmem:[#allocation2 + $0x68] sm:$0xff]
        %v1111 = vld [vmem:[#allocation2 + $0x70] sm:$0xff]
        %v1112 = vld [vmem:[#allocation2 + $0x78] sm:$0xff]
        %v1113 = vld [vmem:[#allocation2 + $0x80] sm:$0xff]
        %v1114 = vld [vmem:[#allocation2 + $0x88] sm:$0xff]
        %v1115 = vld [vmem:[#allocation2 + $0x90] sm:$0xff]
        %v1116 = vld [vmem:[#allocation2 + $0x98] sm:$0xff]
        %v1117 = vld [vmem:[#allocation2 + $0xa0] sm:$0xff]
        %v1118 = vld [vmem:[#allocation2 + $0xa8] sm:$0xff]
        %v1119 = vld [vmem:[#allocation2 + $0xb0] sm:$0xff]
        %v1120 = vld [vmem:[#allocation2 + $0xb8] sm:$0xff]
        %v1121 = vpack.c.bf16 %v1070, %v1067
        %v1122 = vpack.c.bf16 %v1078, %v1075
        %v1123 = vpack.c.bf16 %v1086, %v1083
        %v1124 = vpack.c.bf16 %v1094, %v1091
        %v1125 = vld [vmem:[%s247] sm:$0xff]
        %v1126 = vld [vmem:[%s247 + $0x8] sm:$0xf]
        %v1127 = vld [vmem:[%s247 + $0xc] sm:$0xff]
        %v1128 = vld [vmem:[%s247 + $0x14] sm:$0xf]
        %v1129 = vld [vmem:[%s247 + $0x18] sm:$0xff]
        %v1130 = vld [vmem:[%s247 + $0x20] sm:$0xf]
        %v1131 = vld [vmem:[%s247 + $0x24] sm:$0xff]
        %v1132 = vld [vmem:[%s247 + $0x2c] sm:$0xf]
        %v1133 = vld [vmem:[%s247 + $0x30] sm:$0xff]
        %v1134 = vld [vmem:[%s247 + $0x38] sm:$0xf]
        %v1135 = vld [vmem:[%s247 + $0x3c] sm:$0xff]
        %v1136 = vld [vmem:[%s247 + $0x44] sm:$0xf]
        %v1137 = vld [vmem:[%s247 + $0x48] sm:$0xff]
        %v1138 = vld [vmem:[%s247 + $0x50] sm:$0xf]
        %v1139 = vld [vmem:[%s247 + $0x54] sm:$0xff]
        %v1140 = vld [vmem:[%s247 + $0x5c] sm:$0xf]
        %v1157 = vunpack.c.l.b16 %v1125
        %v1158 = vunpack.c.h.b16 %v1125
        %v1159 = vunpack.c.l.b16 %v1126
        %v1160 = vunpack.c.l.b16 %v1127
        %v1161 = vunpack.c.h.b16 %v1127
        %v1162 = vunpack.c.l.b16 %v1128
        %v1163 = vunpack.c.l.b16 %v1129
        %v1164 = vunpack.c.h.b16 %v1129
        %v1165 = vunpack.c.l.b16 %v1130
        %v1166 = vunpack.c.l.b16 %v1131
        %v1167 = vunpack.c.h.b16 %v1131
        %v1168 = vunpack.c.l.b16 %v1132
        %v1169 = vunpack.c.l.b16 %v1133
        %v1170 = vunpack.c.h.b16 %v1133
        %v1171 = vunpack.c.l.b16 %v1134
        %v1172 = vunpack.c.l.b16 %v1135
        %v1173 = vunpack.c.h.b16 %v1135
        %v1174 = vunpack.c.l.b16 %v1136
        %v1175 = vunpack.c.l.b16 %v1137
        %v1176 = vunpack.c.h.b16 %v1137
        %v1177 = vunpack.c.l.b16 %v1138
        %v1178 = vunpack.c.l.b16 %v1139
        %v1179 = vunpack.c.h.b16 %v1139
        %v1180 = vunpack.c.l.b16 %v1140
        %v1181 = vpack.c.b16 %v1160, %v1157
        %v1182 = vpack.c.b16 %v1161, %v1158
        %v1183 = vpack.c.b16 %v1162, %v1159
        %v1184 = vpack.c.b16 %v1166, %v1163
        %v1185 = vpack.c.b16 %v1167, %v1164
        %v1186 = vpack.c.b16 %v1168, %v1165
        %v1187 = vpack.c.b16 %v1172, %v1169
        %v1188 = vpack.c.b16 %v1173, %v1170
        %v1189 = vpack.c.b16 %v1174, %v1171
        %v1190 = vpack.c.b16 %v1178, %v1175
        %v1191 = vpack.c.b16 %v1179, %v1176
        %v1192 = vpack.c.b16 %v1180, %v1177
        %v1206 = vsel %vm830, %v1121, 0
        %v1209 = vsel %vm830, %v1122, 0
        %v1212 = vsel %vm830, %v1123, 0
        %v1215 = vsel %vm830, %v1124, 0
        %1217 = vmatprep.subr.bf16.mxu0 %v1182
        %1218 = vmatpush1.bf16.msra.mxu0 %v1181
        %1219 = vmatprep.subr.bf16.mxu0 %v1185
        %1220 = vmatpush1.bf16.msra.mxu0 %v1184
        %1221 = vmatprep.subr.bf16.mxu0 %v1188
        %1222 = vmatpush1.bf16.msra.mxu0 %v1187
        %1223 = vmatprep.subr.bf16.mxu0 %v1191
        %1224 = vmatpush1.bf16.msra.mxu0 %v1190
        %1225 = vmatprep.subr.bf16.mxu0 0
        %1226 = vmatpush1.bf16.msra.mxu0 0
        %1227 = vmatprep.subr.bf16.mxu0 0
        %1228 = vmatpush1.bf16.msra.mxu0 0
        %1229 = vmatprep.subr.bf16.mxu0 0
        %1230 = vmatpush1.bf16.msra.mxu0 0
        %1231 = vmatprep.subr.bf16.mxu0 0
        %1232 = vmatpush1.bf16.msra.mxu0 0
        %1233 = vmatprep.subr.bf16.mxu0 0
        %1234 = vmatpush1.bf16.msra.mxu0 0
        %1235 = vmatprep.subr.bf16.mxu0 0
        %1236 = vmatpush1.bf16.msra.mxu0 0
        %1237 = vmatprep.subr.bf16.mxu0 0
        %1238 = vmatpush1.bf16.msra.mxu0 0
        %1239 = vmatprep.subr.bf16.mxu0 0
        %1240 = vmatpush1.bf16.msra.mxu0 0
        %1241 = vmatprep.subr.bf16.mxu0 0
        %1242 = vmatpush1.bf16.msra.mxu0 0
        %1243 = vmatprep.subr.bf16.mxu0 0
        %1244 = vmatpush1.bf16.msra.mxu0 0
        %1245 = vmatprep.subr.bf16.mxu0 0
        %1246 = vmatpush1.bf16.msra.mxu0 0
        %1247 = vmatprep.subr.bf16.mxu0 0
        %1248 = vmatpush1.bf16.msra.mxu0 0
        %1249 = vmatprep.mubr.bf16.mxu0 0
        %1250 = vmatmul.mubr.bf16.gmra.mrb[0].mxu0 %v1206
        %v1251 = vpop.f32.mrb[0].mxu0
        %v1252 = vadd.f32 0.0, %v1251
        %v1253 = vpop.f32.mrb[0].mxu0
        %v1254 = vadd.f32 0.0, %v1253
        %v1255 = vpop.f32.mrb[0].mxu0
        %v1256 = vadd.f32 0.0, %v1255
        %v1257 = vpop.f32.mrb[0].mxu0
        %v1258 = vadd.f32 0.0, %v1257
        %1259 = vmatprep.mubr.bf16.mxu0 0
        %1260 = vmatmul.mubr.bf16.gmra.mrb[0].mxu0 %v1209
        %v1261 = vpop.f32.mrb[0].mxu0
        %v1262 = vadd.f32 0.0, %v1261
        %v1263 = vpop.f32.mrb[0].mxu0
        %v1264 = vadd.f32 0.0, %v1263
        %v1265 = vpop.f32.mrb[0].mxu0
        %v1266 = vadd.f32 0.0, %v1265
        %v1267 = vpop.f32.mrb[0].mxu0
        %v1268 = vadd.f32 0.0, %v1267
        %1269 = vmatprep.mubr.bf16.mxu0 0
        %1270 = vmatmul.mubr.bf16.gmra.mrb[0].mxu0 %v1212
        %v1271 = vpop.f32.mrb[0].mxu0
        %v1272 = vadd.f32 0.0, %v1271
        %v1273 = vpop.f32.mrb[0].mxu0
        %v1274 = vadd.f32 0.0, %v1273
        %v1275 = vpop.f32.mrb[0].mxu0
        %v1276 = vadd.f32 0.0, %v1275
        %v1277 = vpop.f32.mrb[0].mxu0
        %v1278 = vadd.f32 0.0, %v1277
        %1279 = vmatprep.mubr.bf16.mxu0 0
        %1280 = vmatmul.mubr.bf16.gmra.mrb[0].mxu0 %v1215
        %v1281 = vpop.f32.mrb[0].mxu0
        %v1282 = vadd.f32 0.0, %v1281
        %v1283 = vpop.f32.mrb[0].mxu0
        %v1284 = vadd.f32 0.0, %v1283
        %v1285 = vpop.f32.mrb[0].mxu0
        %v1286 = vadd.f32 0.0, %v1285
        %v1287 = vpop.f32.mrb[0].mxu0
        %v1288 = vadd.f32 0.0, %v1287
        %1289 = vdwg.mxu0
        %1290 = vmatprep.subr.bf16.mxu0 0
        %1291 = vmatpush1.bf16.msra.mxu0 %v1183
        %1292 = vmatprep.subr.bf16.mxu0 0
        %1293 = vmatpush1.bf16.msra.mxu0 %v1186
        %1294 = vmatprep.subr.bf16.mxu0 0
        %1295 = vmatpush1.bf16.msra.mxu0 %v1189
        %1296 = vmatprep.subr.bf16.mxu0 0
        %1297 = vmatpush1.bf16.msra.mxu0 %v1192
        %1298 = vmatprep.subr.bf16.mxu0 0
        %1299 = vmatpush1.bf16.msra.mxu0 0
        %1300 = vmatprep.subr.bf16.mxu0 0
        %1301 = vmatpush1.bf16.msra.mxu0 0
        %1302 = vmatprep.subr.bf16.mxu0 0
        %1303 = vmatpush1.bf16.msra.mxu0 0
        %1304 = vmatprep.subr.bf16.mxu0 0
        %1305 = vmatpush1.bf16.msra.mxu0 0
        %1306 = vmatprep.subr.bf16.mxu0 0
        %1307 = vmatpush1.bf16.msra.mxu0 0
        %1308 = vmatprep.subr.bf16.mxu0 0
        %1309 = vmatpush1.bf16.msra.mxu0 0
        %1310 = vmatprep.subr.bf16.mxu0 0
        %1311 = vmatpush1.bf16.msra.mxu0 0
        %1312 = vmatprep.subr.bf16.mxu0 0
        %1313 = vmatpush1.bf16.msra.mxu0 0
        %1314 = vmatprep.subr.bf16.mxu0 0
        %1315 = vmatpush1.bf16.msra.mxu0 0
        %1316 = vmatprep.subr.bf16.mxu0 0
        %1317 = vmatpush1.bf16.msra.mxu0 0
        %1318 = vmatprep.subr.bf16.mxu0 0
        %1319 = vmatpush1.bf16.msra.mxu0 0
        %1320 = vmatprep.subr.bf16.mxu0 0
        %1321 = vmatpush1.bf16.msra.mxu0 0
        %1322 = vmatprep.mubr.bf16.mxu0 0
        %1323 = vmatmul.mubr.bf16.gmra.mrb[0].mxu0 %v1206
        %v1324 = vpop.f32.mrb[0].mxu0
        %v1325 = vadd.f32 0.0, %v1324
        %v1326 = vpop.f32.mrb[0].mxu0
        %v1327 = vpop.f32.mrb[0].mxu0
        %v1328 = vadd.f32 0.0, %v1327
        %v1329 = vpop.f32.mrb[0].mxu0
        %1330 = vmatprep.mubr.bf16.mxu0 0
        %1331 = vmatmul.mubr.bf16.gmra.mrb[0].mxu0 %v1209
        %v1332 = vpop.f32.mrb[0].mxu0
        %v1333 = vadd.f32 0.0, %v1332
        %v1334 = vpop.f32.mrb[0].mxu0
        %v1335 = vpop.f32.mrb[0].mxu0
        %v1336 = vadd.f32 0.0, %v1335
        %v1337 = vpop.f32.mrb[0].mxu0
        %1338 = vmatprep.mubr.bf16.mxu0 0
        %1339 = vmatmul.mubr.bf16.gmra.mrb[0].mxu0 %v1212
        %v1340 = vpop.f32.mrb[0].mxu0
        %v1341 = vadd.f32 0.0, %v1340
        %v1342 = vpop.f32.mrb[0].mxu0
        %v1343 = vpop.f32.mrb[0].mxu0
        %v1344 = vadd.f32 0.0, %v1343
        %v1345 = vpop.f32.mrb[0].mxu0
        %1346 = vmatprep.mubr.bf16.mxu0 0
        %1347 = vmatmul.mubr.bf16.gmra.mrb[0].mxu0 %v1215
        %v1348 = vpop.f32.mrb[0].mxu0
        %v1349 = vadd.f32 0.0, %v1348
        %v1350 = vpop.f32.mrb[0].mxu0
        %v1351 = vpop.f32.mrb[0].mxu0
        %v1352 = vadd.f32 0.0, %v1351
        %v1353 = vpop.f32.mrb[0].mxu0
        %1354 = vdwg.mxu0
        %v1355 = vadd.f32 %v1097, %v1252
        %v1356 = vadd.f32 %v1098, %v1254
        %v1357 = vadd.f32 %v1099, %v1325
        %v1358 = vadd.f32 %v1100, %v1256
        %v1359 = vadd.f32 %v1101, %v1258
        %v1360 = vadd.f32 %v1102, %v1328
        %v1361 = vadd.f32 %v1103, %v1262
        %v1362 = vadd.f32 %v1104, %v1264
        %v1363 = vadd.f32 %v1105, %v1333
        %v1364 = vadd.f32 %v1106, %v1266
        %v1365 = vadd.f32 %v1107, %v1268
        %v1366 = vadd.f32 %v1108, %v1336
        %v1367 = vadd.f32 %v1109, %v1272
        %v1368 = vadd.f32 %v1110, %v1274
        %v1369 = vadd.f32 %v1111, %v1341
        %v1370 = vadd.f32 %v1112, %v1276
        %v1371 = vadd.f32 %v1113, %v1278
        %v1372 = vadd.f32 %v1114, %v1344
        %v1373 = vadd.f32 %v1115, %v1282
        %v1374 = vadd.f32 %v1116, %v1284
        %v1375 = vadd.f32 %v1117, %v1349
        %v1376 = vadd.f32 %v1118, %v1286
        %v1377 = vadd.f32 %v1119, %v1288
        %v1378 = vadd.f32 %v1120, %v1352
        %1379 = vst [vmem:[#allocation2] sm:$0xff] %v1355
        %1380 = vst [vmem:[#allocation2 + $0x8] sm:$0xff] %v1356
        %1381 = vst [vmem:[#allocation2 + $0x10] sm:$0xff] %v1357
        %1382 = vst [vmem:[#allocation2 + $0x18] sm:$0xff] %v1358
        %1383 = vst [vmem:[#allocation2 + $0x20] sm:$0xff] %v1359
        %1384 = vst [vmem:[#allocation2 + $0x28] sm:$0xff] %v1360
        %1385 = vst [vmem:[#allocation2 + $0x30] sm:$0xff] %v1361
        %1386 = vst [vmem:[#allocation2 + $0x38] sm:$0xff] %v1362
        %1387 = vst [vmem:[#allocation2 + $0x40] sm:$0xff] %v1363
        %1388 = vst [vmem:[#allocation2 + $0x48] sm:$0xff] %v1364
        %1389 = vst [vmem:[#allocation2 + $0x50] sm:$0xff] %v1365
        %1390 = vst [vmem:[#allocation2 + $0x58] sm:$0xff] %v1366
        %1391 = vst [vmem:[#allocation2 + $0x60] sm:$0xff] %v1367
        %1392 = vst [vmem:[#allocation2 + $0x68] sm:$0xff] %v1368
        %1393 = vst [vmem:[#allocation2 + $0x70] sm:$0xff] %v1369
        %1394 = vst [vmem:[#allocation2 + $0x78] sm:$0xff] %v1370
        %1395 = vst [vmem:[#allocation2 + $0x80] sm:$0xff] %v1371
        %1396 = vst [vmem:[#allocation2 + $0x88] sm:$0xff] %v1372
        %1397 = vst [vmem:[#allocation2 + $0x90] sm:$0xff] %v1373
        %1398 = vst [vmem:[#allocation2 + $0x98] sm:$0xff] %v1374
        %1399 = vst [vmem:[#allocation2 + $0xa0] sm:$0xff] %v1375
        %1400 = vst [vmem:[#allocation2 + $0xa8] sm:$0xff] %v1376
        %1401 = vst [vmem:[#allocation2 + $0xb0] sm:$0xff] %v1377
        %1402 = vst [vmem:[#allocation2 + $0xb8] sm:$0xff] %v1378
        %p1403 = scmp.eq.s32.totalorder %s23, 5
        // Predicated region
        $region41: #{multi_head_attention.1} parent=35 // pred_check
          %p1404 = pneg %p1403
        $region42: #{multi_head_attention.1} parent=35 // pred_check_branch
          %1406 = sbr.rel (%p1404) target = $region44
        $region43: #{multi_head_attention.1} parent=35 // pred_region
          %v1407 = vld [vmem:[#allocation2] sm:$0xff]
          %v1408 = vld [vmem:[#allocation2 + $0x8] sm:$0xff]
          %v1409 = vld [vmem:[#allocation2 + $0x10] sm:$0xff]
          %v1410 = vld [vmem:[#allocation2 + $0x18] sm:$0xff]
          %v1411 = vld [vmem:[#allocation2 + $0x20] sm:$0xff]
          %v1412 = vld [vmem:[#allocation2 + $0x28] sm:$0xff]
          %v1413 = vld [vmem:[#allocation2 + $0x30] sm:$0xff]
          %v1414 = vld [vmem:[#allocation2 + $0x38] sm:$0xff]
          %v1415 = vld [vmem:[#allocation2 + $0x40] sm:$0xff]
          %v1416 = vld [vmem:[#allocation2 + $0x48] sm:$0xff]
          %v1417 = vld [vmem:[#allocation2 + $0x50] sm:$0xff]
          %v1418 = vld [vmem:[#allocation2 + $0x58] sm:$0xff]
          %v1419 = vld [vmem:[#allocation2 + $0x60] sm:$0xff]
          %v1420 = vld [vmem:[#allocation2 + $0x68] sm:$0xff]
          %v1421 = vld [vmem:[#allocation2 + $0x70] sm:$0xff]
          %v1422 = vld [vmem:[#allocation2 + $0x78] sm:$0xff]
          %v1423 = vld [vmem:[#allocation2 + $0x80] sm:$0xff]
          %v1424 = vld [vmem:[#allocation2 + $0x88] sm:$0xff]
          %v1425 = vld [vmem:[#allocation2 + $0x90] sm:$0xff]
          %v1426 = vld [vmem:[#allocation2 + $0x98] sm:$0xff]
          %v1427 = vld [vmem:[#allocation2 + $0xa0] sm:$0xff]
          %v1428 = vld [vmem:[#allocation2 + $0xa8] sm:$0xff]
          %v1429 = vld [vmem:[#allocation2 + $0xb0] sm:$0xff]
          %v1430 = vld [vmem:[#allocation2 + $0xb8] sm:$0xff]
          %v1431 = vld [vmem:[%s3] sm:$0x7]
          %v1433 = vlaneseq
          %v1434 = vshrl.u32 %v1433, 7
          %v1435 = vsub.s32 0, %v1434
          %v1436 = vrot.slane %v1431, %v1435
          %v1437 = vlaneseq
          %v1438 = vshrl.u32 %v1437, 7
          %v1439 = vsub.s32 1, %v1438
          %v1440 = vrot.slane %v1431, %v1439
          %v1441 = vlaneseq
          %v1442 = vshrl.u32 %v1441, 7
          %v1443 = vsub.s32 2, %v1442
          %v1444 = vrot.slane %v1431, %v1443
          %v1448 = vadd.f32 %v1407, %v1436
          %v1449 = vadd.f32 %v1408, %v1440
          %v1450 = vadd.f32 %v1409, %v1444
          %v1451 = vadd.f32 %v1410, %v1436
          %v1452 = vadd.f32 %v1411, %v1440
          %v1453 = vadd.f32 %v1412, %v1444
          %v1454 = vadd.f32 %v1413, %v1436
          %v1455 = vadd.f32 %v1414, %v1440
          %v1456 = vadd.f32 %v1415, %v1444
          %v1457 = vadd.f32 %v1416, %v1436
          %v1458 = vadd.f32 %v1417, %v1440
          %v1459 = vadd.f32 %v1418, %v1444
          %v1460 = vadd.f32 %v1419, %v1436
          %v1461 = vadd.f32 %v1420, %v1440
          %v1462 = vadd.f32 %v1421, %v1444
          %v1463 = vadd.f32 %v1422, %v1436
          %v1464 = vadd.f32 %v1423, %v1440
          %v1465 = vadd.f32 %v1424, %v1444
          %v1466 = vadd.f32 %v1425, %v1436
          %v1467 = vadd.f32 %v1426, %v1440
          %v1468 = vadd.f32 %v1427, %v1444
          %v1469 = vadd.f32 %v1428, %v1436
          %v1470 = vadd.f32 %v1429, %v1440
          %v1471 = vadd.f32 %v1430, %v1444
          %v1472 = vpack.c.bf16 %v1451, %v1448
          %v1473 = vpack.c.bf16 %v1452, %v1449
          %v1474 = vpack.c.bf16 %v1453, %v1450
          %v1475 = vpack.c.bf16 %v1457, %v1454
          %v1476 = vpack.c.bf16 %v1458, %v1455
          %v1477 = vpack.c.bf16 %v1459, %v1456
          %v1478 = vpack.c.bf16 %v1463, %v1460
          %v1479 = vpack.c.bf16 %v1464, %v1461
          %v1480 = vpack.c.bf16 %v1465, %v1462
          %v1481 = vpack.c.bf16 %v1469, %v1466
          %v1482 = vpack.c.bf16 %v1470, %v1467
          %v1483 = vpack.c.bf16 %v1471, %v1468
          %v1496 = vunpack.c.l.b16 %v1472
          %v1497 = vunpack.c.l.b16 %v1473
          %v1498 = vunpack.c.l.b16 %v1474
          %v1499 = vunpack.c.h.b16 %v1472
          %v1500 = vunpack.c.h.b16 %v1473
          %v1501 = vunpack.c.h.b16 %v1474
          %v1502 = vunpack.c.l.b16 %v1475
          %v1503 = vunpack.c.l.b16 %v1476
          %v1504 = vunpack.c.l.b16 %v1477
          %v1505 = vunpack.c.h.b16 %v1475
          %v1506 = vunpack.c.h.b16 %v1476
          %v1507 = vunpack.c.h.b16 %v1477
          %v1508 = vunpack.c.l.b16 %v1478
          %v1509 = vunpack.c.l.b16 %v1479
          %v1510 = vunpack.c.l.b16 %v1480
          %v1511 = vunpack.c.h.b16 %v1478
          %v1512 = vunpack.c.h.b16 %v1479
          %v1513 = vunpack.c.h.b16 %v1480
          %v1514 = vunpack.c.l.b16 %v1481
          %v1515 = vunpack.c.l.b16 %v1482
          %v1516 = vunpack.c.l.b16 %v1483
          %v1517 = vunpack.c.h.b16 %v1481
          %v1518 = vunpack.c.h.b16 %v1482
          %v1519 = vunpack.c.h.b16 %v1483
          %v1520 = vpack.c.b16 %v1497, %v1496
          %v1521 = vpack.c.b16 %v1498, %v1498
          %v1522 = vpack.c.b16 %v1500, %v1499
          %v1523 = vpack.c.b16 %v1501, %v1501
          %v1524 = vpack.c.b16 %v1503, %v1502
          %v1525 = vpack.c.b16 %v1504, %v1504
          %v1526 = vpack.c.b16 %v1506, %v1505
          %v1527 = vpack.c.b16 %v1507, %v1507
          %v1528 = vpack.c.b16 %v1509, %v1508
          %v1529 = vpack.c.b16 %v1510, %v1510
          %v1530 = vpack.c.b16 %v1512, %v1511
          %v1531 = vpack.c.b16 %v1513, %v1513
          %v1532 = vpack.c.b16 %v1515, %v1514
          %v1533 = vpack.c.b16 %v1516, %v1516
          %v1534 = vpack.c.b16 %v1518, %v1517
          %v1535 = vpack.c.b16 %v1519, %v1519
          %1552 = vst [vmem:[%s232] sm:$0xff] %v1520
          %1553 = vst [vmem:[%s232 + $0x8] sm:$0xf] %v1521
          %1554 = vst [vmem:[%s232 + $0xc] sm:$0xff] %v1522
          %1555 = vst [vmem:[%s232 + $0x14] sm:$0xf] %v1523
          %1556 = vst [vmem:[%s232 + $0x18] sm:$0xff] %v1524
          %1557 = vst [vmem:[%s232 + $0x20] sm:$0xf] %v1525
          %1558 = vst [vmem:[%s232 + $0x24] sm:$0xff] %v1526
          %1559 = vst [vmem:[%s232 + $0x2c] sm:$0xf] %v1527
          %1560 = vst [vmem:[%s232 + $0x30] sm:$0xff] %v1528
          %1561 = vst [vmem:[%s232 + $0x38] sm:$0xf] %v1529
          %1562 = vst [vmem:[%s232 + $0x3c] sm:$0xff] %v1530
          %1563 = vst [vmem:[%s232 + $0x44] sm:$0xf] %v1531
          %1564 = vst [vmem:[%s232 + $0x48] sm:$0xff] %v1532
          %1565 = vst [vmem:[%s232 + $0x50] sm:$0xf] %v1533
          %1566 = vst [vmem:[%s232 + $0x54] sm:$0xff] %v1534
          %1567 = vst [vmem:[%s232 + $0x5c] sm:$0xf] %v1535
        $region44: #{multi_head_attention.1} parent=35 // pred_fallthru
          _
        %s1568 = sand.u32 %s137, 1
        %s1569 = scalar_lea.sflag [#allocation4], %s1568
        %s1570 = sand.u32 %s137, 1
        %s1571 = smul.addr %s1570, 96
        %s1572 = scalar_lea.vmem [#allocation3], %s1571
        // Predicated region
        $region45: #{multi_head_attention.1} parent=35 // pred_check
          %p1573 = pneg %p147
        $region46: #{multi_head_attention.1} parent=35 // pred_check_branch
          %1575 = sbr.rel (%p1573) target = $region48
        $region47: #{multi_head_attention.1} parent=35 // pred_region
          %s1577 = ssub.s32 1536, 1536
          %1578 = vsyncadd %s1569, %s1577
          %s1579 = smul.addr %s22, 24
          %s1580 = smul.addr %s1579, 64
          %s1581 = scalar_lea.hbm %s4, %s1580
          %s1582 = sshll.u32 %s1572, 4
          %s1583 = int_to_ptr.vmem [resolvable:$true] %s1582
          %1588 = dma.vmem_to_hbm [thread:$0]  %s1583, 1536, %s1581, %s1569, 192, 192, 12
        $region48: #{multi_head_attention.1} parent=35 // pred_fallthru
          _
      $region36: #{multi_head_attention.1} parent=5 // pred_fallthru
        _
      %p1589 = scmp.le.s32.totalorder 2, %s13
      // Predicated region
      $region49: #{multi_head_attention.1} parent=5 // pred_check
        %p1590 = pneg %p1589
      $region50: #{multi_head_attention.1} parent=5 // pred_check_branch
        %1592 = sbr.rel (%p1590) target = $region52
      $region51: #{multi_head_attention.1} parent=5 // pred_region
        %s1593 = ssub.s32 %s13, 2
        // Predicated region
        $region53: #{multi_head_attention.1} parent=51 // pred_check
          %p1594 = pneg %p153
        $region54: #{multi_head_attention.1} parent=51 // pred_check_branch
          %1596 = sbr.rel (%p1594) target = $region56
        $region55: #{multi_head_attention.1} parent=51 // pred_region
          %s1597 = sand.u32 %s138, 1
          %s1598 = scalar_lea.sflag [#allocation4], %s1597
          %s1599 = sand.u32 %s138, 1
          %s1600 = smul.addr %s1599, 96
          %s1601 = scalar_lea.vmem [#allocation3], %s1600
          %1602 = dma.done %s1598, 1536
        $region56: #{multi_head_attention.1} parent=51 // pred_fallthru
          _
      $region52: #{multi_head_attention.1} parent=5 // pred_fallthru
        _
    $region6: #{multi_head_attention.1} parent=1 // loop_footer
      %s17 = sadd.s32 1, %s13
    $region7: #{multi_head_attention.1} parent=1 // loop_footer_branch
      %12 = sbr.rel target = $region3
    $region8: #{multi_head_attention.1} parent=1 // loop_exit
      _
    %1603 = vsyncpa [#allocation4], 1
    %s1604 = scalar_lea.sflag [#allocation4], 1
    %1605 = vsyncpa %s1604, 1

</llo_original>
